<compile_context>
chip_gen: v6e
topology: v6e:2x2x1
jax: 0.10.0
libtpu: 0.0.40
codegen_flags: <defaults>
</compile_context>

<pallas_src>
import jax
import jax.numpy as jnp
from jax.experimental import pallas as pl
from jax.experimental.pallas import tpu as pltpu

# Layer widths (out dim of fc4 padded 784 -> 896 = 7*128).
D_IN, D1, D2, D3, D4_REAL, D4_PAD = 64, 128, 256, 512, 784, 896
_B_OFFS = (0, D1, D1 + D2, D1 + D2 + D3, D1 + D2 + D3 + D4_PAD)  # 0,128,384,896,1792


def _round_up(x, m):
    return ((x + m - 1) // m) * m


def decoder_kernel(x_ref, w1_ref, w2_ref, w3_ref, w4_ref, bcat_ref, o_ref):
    # Static slices of the concatenated bias row (f32, (1, N) broadcasts over
    # the batch/sublane axis).
    b1 = bcat_ref[:, _B_OFFS[0]:_B_OFFS[1]]
    b2 = bcat_ref[:, _B_OFFS[1]:_B_OFFS[2]]
    b3 = bcat_ref[:, _B_OFFS[2]:_B_OFFS[3]]
    b4 = bcat_ref[:, _B_OFFS[3]:_B_OFFS[4]]

    # Layer 1: (TB,64)bf16 @ (64,128)bf16 -> f32, +b, ReLU
    h = jnp.dot(x_ref[...].astype(jnp.bfloat16), w1_ref[...],
                preferred_element_type=jnp.float32)
    h = jnp.maximum(h + b1, 0.0).astype(jnp.bfloat16)
    # Layer 2: (TB,128) @ (128,256)
    h = jnp.dot(h, w2_ref[...], preferred_element_type=jnp.float32)
    h = jnp.maximum(h + b2, 0.0).astype(jnp.bfloat16)
    # Layer 3: (TB,256) @ (256,512)
    h = jnp.dot(h, w3_ref[...], preferred_element_type=jnp.float32)
    h = jnp.maximum(h + b3, 0.0).astype(jnp.bfloat16)
    # Layer 4: (TB,512) @ (512,896) + b -> sigmoid
    z = jnp.dot(h, w4_ref[...], preferred_element_type=jnp.float32) + b4
    o_ref[...] = jax.nn.sigmoid(z).astype(o_ref.dtype)


def decoder_forward(x, params):
    """x: (B, 64) float32. params: w1..w4 in (in,out) bf16 (w4 padded to 896),
    b1..b4 f32 rows (b4 padded to 896). Returns (B, 784) float32."""
    B = x.shape[0]
    # Batch tile: up to 256 rows per grid step, sublane-aligned.
    tb = min(256, _round_up(B, 8))
    b_pad = _round_up(B, tb)
    if b_pad != B:
        x = jnp.pad(x, ((0, b_pad - B), (0, 0)))
    grid = (b_pad // tb,)

    w1, w2, w3, w4 = params["w1"], params["w2"], params["w3"], params["w4"]
    bcat = jnp.concatenate(
        [params["b1"], params["b2"], params["b3"], params["b4"]], axis=1)  # (1,1792)

    def full(shape):
        # Whole array resident in VMEM; constant block index => not re-DMA'd
        # across batch tiles.
        return pl.BlockSpec(shape, lambda i: tuple(0 for _ in shape))

    flops_per_row = 2 * (D_IN * D1 + D1 * D2 + D2 * D3 + D3 * D4_PAD)
    bytes_accessed = (
        x.size * 4
        + sum(int(w.size) * 2 for w in (w1, w2, w3, w4))
        + int(bcat.size) * 4
        + b_pad * D4_PAD * 4
    )

    out = pl.pallas_call(
        decoder_kernel,
        out_shape=jax.ShapeDtypeStruct((b_pad, D4_PAD), jnp.float32),
        grid=grid,
        in_specs=[
            pl.BlockSpec((tb, D_IN), lambda i: (i, 0)),   # x: batch-tiled
            full(w1.shape), full(w2.shape), full(w3.shape), full(w4.shape),
            full(bcat.shape),
        ],
        out_specs=pl.BlockSpec((tb, D4_PAD), lambda i: (i, 0)),
        compiler_params=pltpu.CompilerParams(
            dimension_semantics=("parallel",)),
        cost_estimate=pl.CostEstimate(
            flops=flops_per_row * b_pad,
            transcendentals=b_pad * D4_PAD,
            bytes_accessed=bytes_accessed),
    )(x, w1, w2, w3, w4, bcat)

    return out[:B, :D4_REAL]


def init_params(key):
    """PyTorch-style init U(-1/sqrt(fan_in), 1/sqrt(fan_in)).
    Weights stored transposed (in, out) and cast to bf16; fc4 zero-padded to
    896 output features."""
    dims = [D_IN, D1, D2, D3, D4_REAL]
    params = {}
    for i, (fan_in, fan_out) in enumerate(zip(dims[:-1], dims[1:]), start=1):
        key, kw, kb = jax.random.split(key, 3)
        bound = 1.0 / (fan_in ** 0.5)
        w = jax.random.uniform(kw, (fan_in, fan_out), jnp.float32, -bound, bound)
        b = jax.random.uniform(kb, (1, fan_out), jnp.float32, -bound, bound)
        if fan_out == D4_REAL:  # pad final layer 784 -> 896 with zeros
            w = jnp.pad(w, ((0, 0), (0, D4_PAD - D4_REAL)))
            b = jnp.pad(b, ((0, 0), (0, D4_PAD - D4_REAL)))
        params[f"w{i}"] = w.astype(jnp.bfloat16)
        params[f"b{i}"] = b  # keep biases f32
    return params


def decoder_reference(x, params):
    """Pure-JAX reference mirroring the kernel's bf16 matmul / f32 accumulate."""
    def layer(h, w, b):
        return jnp.dot(h.astype(jnp.bfloat16), w,
                       preferred_element_type=jnp.float32) + b
    h = jnp.maximum(layer(x, params["w1"], params["b1"]), 0.0)
    h = jnp.maximum(layer(h, params["w2"], params["b2"]), 0.0)
    h = jnp.maximum(layer(h, params["w3"], params["b3"]), 0.0)
    z = layer(h, params["w4"], params["b4"])
    return jax.nn.sigmoid(z)[:, :D4_REAL]


if __name__ == "__main__":
    key = jax.random.PRNGKey(0)
    key, kx = jax.random.split(key)
    params = init_params(key)

    # Small batch (single tile).
    B = 8
    x = jax.random.normal(kx, (B, D_IN), jnp.float32)
    out = jax.block_until_ready(decoder_forward(x, params))
    ref = decoder_reference(x, params)
    assert out.shape == (B, D4_REAL), out.shape
    assert jnp.allclose(out, ref, atol=2e-2, rtol=2e-2), "mismatch (B=8)"

    # Larger batch exercising batch tiling + padding (grid=(2,), TB=256).
    key, kx2 = jax.random.split(key)
    B2 = 300
    x2 = jax.random.normal(kx2, (B2, D_IN), jnp.float32)
    out2 = jax.block_until_ready(decoder_forward(x2, params))
    ref2 = decoder_reference(x2, params)
    assert out2.shape == (B2, D4_REAL), out2.shape
    assert jnp.allclose(out2, ref2, atol=2e-2, rtol=2e-2), "mismatch (B=300)"

    print("KERNEL_OK")
</pallas_src>

<mosaic_0001>
module attributes {stable_mosaic.version = 11 : i64} {
  func.func @decoder_kernel(%arg0: i32, %arg1: memref<8x64xf32, #tpu.memory_space<vmem>>, %arg2: memref<64x128xbf16, #tpu.memory_space<vmem>>, %arg3: memref<128x256xbf16, #tpu.memory_space<vmem>>, %arg4: memref<256x512xbf16, #tpu.memory_space<vmem>>, %arg5: memref<512x896xbf16, #tpu.memory_space<vmem>>, %arg6: memref<1x1792xf32, #tpu.memory_space<vmem>>, %arg7: memref<8x896xf32, #tpu.memory_space<vmem>>) attributes {dimension_semantics = [#tpu.dimension_semantics<parallel>], iteration_bounds = array<i64: 1>, scalar_prefetch = 0 : i64, scratch_operands = 0 : i64, tpu.core_type = #tpu.core_type<tc>, window_params = [{transform_indices = @transform_0, window_bounds = array<i64: 8, 64>}, {pipeline_mode = #tpu.pipeline_mode<synchronous>, transform_indices = @transform_1, window_bounds = array<i64: 64, 128>}, {pipeline_mode = #tpu.pipeline_mode<synchronous>, transform_indices = @transform_2, window_bounds = array<i64: 128, 256>}, {pipeline_mode = #tpu.pipeline_mode<synchronous>, transform_indices = @transform_3, window_bounds = array<i64: 256, 512>}, {pipeline_mode = #tpu.pipeline_mode<synchronous>, transform_indices = @transform_4, window_bounds = array<i64: 512, 896>}, {pipeline_mode = #tpu.pipeline_mode<synchronous>, transform_indices = @transform_5, window_bounds = array<i64: 1, 1792>}, {transform_indices = @transform_6, window_bounds = array<i64: 8, 896>}]} {
    %c0 = arith.constant 0 : index
    %c0_0 = arith.constant 0 : index
    %0 = vector.load %arg6[%c0, %c0_0] : memref<1x1792xf32, #tpu.memory_space<vmem>>, vector<1x128xf32>
    %c0_1 = arith.constant 0 : index
    %c128 = arith.constant 128 : index
    %1 = vector.load %arg6[%c0_1, %c128] : memref<1x1792xf32, #tpu.memory_space<vmem>>, vector<1x256xf32>
    %c0_2 = arith.constant 0 : index
    %c384 = arith.constant 384 : index
    %2 = vector.load %arg6[%c0_2, %c384] : memref<1x1792xf32, #tpu.memory_space<vmem>>, vector<1x512xf32>
    %c0_3 = arith.constant 0 : index
    %c896 = arith.constant 896 : index
    %3 = vector.load %arg6[%c0_3, %c896] : memref<1x1792xf32, #tpu.memory_space<vmem>>, vector<1x896xf32>
    %c0_4 = arith.constant 0 : index
    %c0_5 = arith.constant 0 : index
    %4 = vector.load %arg1[%c0_4, %c0_5] : memref<8x64xf32, #tpu.memory_space<vmem>>, vector<8x64xf32>
    %5 = arith.truncf %4 : vector<8x64xf32> to vector<8x64xbf16>
    %c0_6 = arith.constant 0 : index
    %c0_7 = arith.constant 0 : index
    %6 = vector.load %arg2[%c0_6, %c0_7] : memref<64x128xbf16, #tpu.memory_space<vmem>>, vector<64x128xbf16>
    %cst = arith.constant dense<0.000000e+00> : vector<8x128xf32>
    %7 = tpu.matmul %5, %6, %cst {dimension_numbers = #tpu.dot_dimension_numbers<[1], [0], [0], [1], [0, 0, 1, 1], [], []>} : vector<8x64xbf16>, vector<64x128xbf16>, vector<8x128xf32> -> vector<8x128xf32>
    %8 = vector.broadcast %0 : vector<1x128xf32> to vector<8x128xf32>
    %9 = arith.addf %7, %8 : vector<8x128xf32>
    %cst_8 = arith.constant 0.000000e+00 : f32
    %10 = vector.broadcast %cst_8 : f32 to vector<8x128xf32>
    %11 = arith.maximumf %9, %10 : vector<8x128xf32>
    %12 = arith.truncf %11 : vector<8x128xf32> to vector<8x128xbf16>
    %c0_9 = arith.constant 0 : index
    %c0_10 = arith.constant 0 : index
    %13 = vector.load %arg3[%c0_9, %c0_10] : memref<128x256xbf16, #tpu.memory_space<vmem>>, vector<128x256xbf16>
    %cst_11 = arith.constant dense<0.000000e+00> : vector<8x256xf32>
    %14 = tpu.matmul %12, %13, %cst_11 {dimension_numbers = #tpu.dot_dimension_numbers<[1], [0], [0], [1], [0, 0, 1, 1], [], []>} : vector<8x128xbf16>, vector<128x256xbf16>, vector<8x256xf32> -> vector<8x256xf32>
    %15 = vector.broadcast %1 : vector<1x256xf32> to vector<8x256xf32>
    %16 = arith.addf %14, %15 : vector<8x256xf32>
    %cst_12 = arith.constant 0.000000e+00 : f32
    %17 = vector.broadcast %cst_12 : f32 to vector<8x256xf32>
    %18 = arith.maximumf %16, %17 : vector<8x256xf32>
    %19 = arith.truncf %18 : vector<8x256xf32> to vector<8x256xbf16>
    %c0_13 = arith.constant 0 : index
    %c0_14 = arith.constant 0 : index
    %20 = vector.load %arg4[%c0_13, %c0_14] : memref<256x512xbf16, #tpu.memory_space<vmem>>, vector<256x512xbf16>
    %cst_15 = arith.constant dense<0.000000e+00> : vector<8x512xf32>
    %21 = tpu.matmul %19, %20, %cst_15 {dimension_numbers = #tpu.dot_dimension_numbers<[1], [0], [0], [1], [0, 0, 1, 1], [], []>} : vector<8x256xbf16>, vector<256x512xbf16>, vector<8x512xf32> -> vector<8x512xf32>
    %22 = vector.broadcast %2 : vector<1x512xf32> to vector<8x512xf32>
    %23 = arith.addf %21, %22 : vector<8x512xf32>
    %cst_16 = arith.constant 0.000000e+00 : f32
    %24 = vector.broadcast %cst_16 : f32 to vector<8x512xf32>
    %25 = arith.maximumf %23, %24 : vector<8x512xf32>
    %26 = arith.truncf %25 : vector<8x512xf32> to vector<8x512xbf16>
    %c0_17 = arith.constant 0 : index
    %c0_18 = arith.constant 0 : index
    %27 = vector.load %arg5[%c0_17, %c0_18] : memref<512x896xbf16, #tpu.memory_space<vmem>>, vector<512x896xbf16>
    %cst_19 = arith.constant dense<0.000000e+00> : vector<8x896xf32>
    %28 = tpu.matmul %26, %27, %cst_19 {dimension_numbers = #tpu.dot_dimension_numbers<[1], [0], [0], [1], [0, 0, 1, 1], [], []>} : vector<8x512xbf16>, vector<512x896xbf16>, vector<8x896xf32> -> vector<8x896xf32>
    %29 = vector.broadcast %3 : vector<1x896xf32> to vector<8x896xf32>
    %30 = arith.addf %28, %29 : vector<8x896xf32>
    %31 = arith.negf %30 : vector<8x896xf32>
    %32 = math.exp %31 : vector<8x896xf32>
    %cst_20 = arith.constant 1.000000e+00 : f32
    %33 = vector.broadcast %cst_20 : f32 to vector<8x896xf32>
    %34 = arith.addf %33, %32 : vector<8x896xf32>
    %35 = arith.divf %33, %34 : vector<8x896xf32>
    %c0_21 = arith.constant 0 : index
    %c0_22 = arith.constant 0 : index
    %36 = vector.load %arg7[%c0_21, %c0_22] : memref<8x896xf32, #tpu.memory_space<vmem>>, vector<8x896xf32>
    tpu.vector_store %arg7[%c0_21, %c0_22], %35 {strides = array<i32>} : memref<8x896xf32, #tpu.memory_space<vmem>>, vector<8x896xf32>,
    return
  }
  func.func @transform_0(%arg0: i32) -> (i32, i32) {
    %c0_i32 = arith.constant 0 : i32
    %c0_i32_0 = arith.constant 0 : i32
    return %arg0, %c0_i32 : i32, i32
  }
  func.func @transform_1(%arg0: i32) -> (i32, i32) {
    %c0_i32 = arith.constant 0 : i32
    %c0_i32_0 = arith.constant 0 : i32
    %c0_i32_1 = arith.constant 0 : i32
    return %c0_i32, %c0_i32_0 : i32, i32
  }
  func.func @transform_2(%arg0: i32) -> (i32, i32) {
    %c0_i32 = arith.constant 0 : i32
    %c0_i32_0 = arith.constant 0 : i32
    %c0_i32_1 = arith.constant 0 : i32
    return %c0_i32, %c0_i32_0 : i32, i32
  }
  func.func @transform_3(%arg0: i32) -> (i32, i32) {
    %c0_i32 = arith.constant 0 : i32
    %c0_i32_0 = arith.constant 0 : i32
    %c0_i32_1 = arith.constant 0 : i32
    return %c0_i32, %c0_i32_0 : i32, i32
  }
  func.func @transform_4(%arg0: i32) -> (i32, i32) {
    %c0_i32 = arith.constant 0 : i32
    %c0_i32_0 = arith.constant 0 : i32
    %c0_i32_1 = arith.constant 0 : i32
    return %c0_i32, %c0_i32_0 : i32, i32
  }
  func.func @transform_5(%arg0: i32) -> (i32, i32) {
    %c0_i32 = arith.constant 0 : i32
    %c0_i32_0 = arith.constant 0 : i32
    %c0_i32_1 = arith.constant 0 : i32
    return %c0_i32, %c0_i32_0 : i32, i32
  }
  func.func @transform_6(%arg0: i32) -> (i32, i32) {
    %c0_i32 = arith.constant 0 : i32
    %c0_i32_0 = arith.constant 0 : i32
    return %arg0, %c0_i32 : i32, i32
  }
}

</mosaic_0001>

<llo_original>
// kernel: tpu_custom_call.1
$region0: #{tpu_custom_call.1}
  #allocation0 [shape = 'u32[]', space=smem, size = 0x4, offset = 0x4, fixed_abs, tag = 'smem constant byte address 0x4 - core index']
  #allocation1 [shape = 'u32[144,128]{1,0:T(1,128)}', space=vmem, size = 0x12000, scoped, tag = 'internal scratch']
  %s0 = inlined_call_operand.hbm [shape: f32[8,64], index: 0, kind: input, shape index: {}]
  %s1 = inlined_call_operand.hbm [shape: bf16[64,128], index: 1, kind: input, shape index: {}]
  %s2 = inlined_call_operand.hbm [shape: bf16[128,256], index: 2, kind: input, shape index: {}]
  %s3 = inlined_call_operand.hbm [shape: bf16[256,512], index: 3, kind: input, shape index: {}]
  %s4 = inlined_call_operand.hbm [shape: bf16[512,896], index: 4, kind: input, shape index: {}]
  %s5 = inlined_call_operand.hbm [shape: f32[1,1792], index: 5, kind: input, shape index: {}]
  %s6 = inlined_call_operand.hbm [shape: f32[8,896], index: 6, kind: output, shape index: {}]
  %s7 = sld [smem:[#allocation0]]
  $region58: #{tpu_custom_call.1} parent=0
    _
  %s9 = ssub.s32 1, %s7
  %s10 = scalar_select 0, %s9, %s7
  $region1: #{tpu_custom_call.1} parent=0
    #allocation2 [shape = 'u8[4096]{0}', space=vmem, size = 0x1000, scoped, tag = 'input window, operand 0, single buffered']
    #allocation3 [shape = 's32[1]{0}', space=sflag, size = 0x4, scoped, tag = 'scoped memory for tpu_custom_call.1']
    #allocation4 [shape = 's32[1]{0}', space=sflag, size = 0x4, scoped, tag = 'scoped memory for tpu_custom_call.1']
    #allocation5 [shape = 'u8[16384]{0}', space=vmem, size = 0x4000, scoped, tag = 'input window, operand 1, single buffered']
    #allocation6 [shape = 's32[1]{0}', space=sflag, size = 0x4, scoped, tag = 'scoped memory for tpu_custom_call.1']
    #allocation7 [shape = 'u8[65536]{0}', space=vmem, size = 0x10000, scoped, tag = 'input window, operand 2, single buffered']
    #allocation8 [shape = 'u8[262144]{0}', space=vmem, size = 0x40000, scoped, tag = 'input window, operand 3, single buffered']
    #allocation9 [shape = 's32[1]{0}', space=sflag, size = 0x4, scoped, tag = 'scoped memory for tpu_custom_call.1']
    #allocation10 [shape = 'u8[917504]{0}', space=vmem, size = 0xe0000, scoped, tag = 'input window, operand 4, single buffered']
    #allocation11 [shape = 'u8[7168]{0}', space=vmem, size = 0x1c00, scoped, tag = 'input window, operand 5, single buffered']
    #allocation12 [shape = 's32[1]{0}', space=sflag, size = 0x4, scoped, tag = 'scoped memory for tpu_custom_call.1']
    #allocation13 [shape = 'u8[28672]{0}', space=vmem, size = 0x7000, scoped, tag = 'output window, operand 0, single buffered']
    %11 = vsyncpa [#allocation3], 0
    %12 = vsyncpa [#allocation6], 0
    %13 = vsyncpa [#allocation9], 0
    %14 = vsyncpa [#allocation12], 0
    %15 = vsyncpa [#allocation4], 0
    // Predicated region
    $region2: #{tpu_custom_call.1} parent=1 // pred_check
      _
    $region3: #{tpu_custom_call.1} parent=1 // pred_check_branch
      %17 = sbr.rel (0) target = $region5
    $region4: #{tpu_custom_call.1} parent=1 // pred_region
      %s19 = ssub.s32 128, 128
      %20 = vsyncadd [#allocation3], %s19
      %s22 = sshll.u32 [#allocation2], 4
      %s23 = int_to_ptr.vmem [resolvable:$true] %s22
      %25 = dma.hbm_to_vmem [thread:$0]  %s0, 128, %s23, [#allocation3]
    $region5: #{tpu_custom_call.1} parent=1 // pred_fallthru
      _
    // Predicated region
    $region6: #{tpu_custom_call.1} parent=1 // pred_check
      _
    $region7: #{tpu_custom_call.1} parent=1 // pred_check_branch
      %27 = sbr.rel (0) target = $region9
    $region8: #{tpu_custom_call.1} parent=1 // pred_region
      %s29 = ssub.s32 512, 512
      %30 = vsyncadd [#allocation6], %s29
      %s31 = sshll.u32 [#allocation5], 4
      %s32 = int_to_ptr.vmem [resolvable:$true] %s31
      %37 = dma.hbm_to_vmem [thread:$0]  %s1, 512, %s32, [#allocation6], 64, 64, 4
    $region9: #{tpu_custom_call.1} parent=1 // pred_fallthru
      _
    // Predicated region
    $region10: #{tpu_custom_call.1} parent=1 // pred_check
      _
    $region11: #{tpu_custom_call.1} parent=1 // pred_check_branch
      %39 = sbr.rel (0) target = $region13
    $region12: #{tpu_custom_call.1} parent=1 // pred_region
      %s41 = ssub.s32 2048, 2048
      %42 = vsyncadd [#allocation6], %s41
      %s43 = sshll.u32 [#allocation7], 4
      %s44 = int_to_ptr.vmem [resolvable:$true] %s43
      %49 = dma.hbm_to_vmem [thread:$0]  %s2, 2048, %s44, [#allocation6], 128, 128, 8
    $region13: #{tpu_custom_call.1} parent=1 // pred_fallthru
      _
    // Predicated region
    $region14: #{tpu_custom_call.1} parent=1 // pred_check
      _
    $region15: #{tpu_custom_call.1} parent=1 // pred_check_branch
      %51 = sbr.rel (0) target = $region17
    $region16: #{tpu_custom_call.1} parent=1 // pred_region
      %s53 = ssub.s32 8192, 8192
      %54 = vsyncadd [#allocation9], %s53
      %s55 = sshll.u32 [#allocation8], 4
      %s56 = int_to_ptr.vmem [resolvable:$true] %s55
      %61 = dma.hbm_to_vmem [thread:$0]  %s3, 8192, %s56, [#allocation9], 256, 256, 16
    $region17: #{tpu_custom_call.1} parent=1 // pred_fallthru
      _
    // Predicated region
    $region18: #{tpu_custom_call.1} parent=1 // pred_check
      _
    $region19: #{tpu_custom_call.1} parent=1 // pred_check_branch
      %63 = sbr.rel (0) target = $region21
    $region20: #{tpu_custom_call.1} parent=1 // pred_region
      %s65 = ssub.s32 28672, 28672
      %66 = vsyncadd [#allocation9], %s65
      %s67 = sshll.u32 [#allocation10], 4
      %s68 = int_to_ptr.vmem [resolvable:$true] %s67
      %73 = dma.hbm_to_vmem [thread:$0]  %s4, 28672, %s68, [#allocation9], 448, 448, 28
    $region21: #{tpu_custom_call.1} parent=1 // pred_fallthru
      _
    // Predicated region
    $region22: #{tpu_custom_call.1} parent=1 // pred_check
      _
    $region23: #{tpu_custom_call.1} parent=1 // pred_check_branch
      %75 = sbr.rel (0) target = $region25
    $region24: #{tpu_custom_call.1} parent=1 // pred_region
      %s77 = ssub.s32 224, 224
      %78 = vsyncadd [#allocation12], %s77
      %s80 = sshll.u32 [#allocation11], 4
      %s81 = int_to_ptr.vmem [resolvable:$true] %s80
      %83 = dma.hbm_to_vmem [thread:$0]  %s5, 224, %s81, [#allocation12]
    $region25: #{tpu_custom_call.1} parent=1 // pred_fallthru
      _
    // Predicated region
    $region26: #{tpu_custom_call.1} parent=1 // pred_check
      _
    $region27: #{tpu_custom_call.1} parent=1 // pred_check_branch
      %85 = sbr.rel (0) target = $region29
    $region28: #{tpu_custom_call.1} parent=1 // pred_region
      %86 = dma.done [#allocation3], 128
    $region29: #{tpu_custom_call.1} parent=1 // pred_fallthru
      _
    // Predicated region
    $region30: #{tpu_custom_call.1} parent=1 // pred_check
      _
    $region31: #{tpu_custom_call.1} parent=1 // pred_check_branch
      %88 = sbr.rel (0) target = $region33
    $region32: #{tpu_custom_call.1} parent=1 // pred_region
      %89 = dma.done [#allocation6], 512
    $region33: #{tpu_custom_call.1} parent=1 // pred_fallthru
      _
    // Predicated region
    $region34: #{tpu_custom_call.1} parent=1 // pred_check
      _
    $region35: #{tpu_custom_call.1} parent=1 // pred_check_branch
      %91 = sbr.rel (0) target = $region37
    $region36: #{tpu_custom_call.1} parent=1 // pred_region
      %92 = dma.done [#allocation6], 2048
    $region37: #{tpu_custom_call.1} parent=1 // pred_fallthru
      _
    // Predicated region
    $region38: #{tpu_custom_call.1} parent=1 // pred_check
      _
    $region39: #{tpu_custom_call.1} parent=1 // pred_check_branch
      %94 = sbr.rel (0) target = $region41
    $region40: #{tpu_custom_call.1} parent=1 // pred_region
      %95 = dma.done [#allocation9], 8192
    $region41: #{tpu_custom_call.1} parent=1 // pred_fallthru
      _
    // Predicated region
    $region42: #{tpu_custom_call.1} parent=1 // pred_check
      _
    $region43: #{tpu_custom_call.1} parent=1 // pred_check_branch
      %97 = sbr.rel (0) target = $region45
    $region44: #{tpu_custom_call.1} parent=1 // pred_region
      %98 = dma.done [#allocation9], 28672
    $region45: #{tpu_custom_call.1} parent=1 // pred_fallthru
      _
    // Predicated region
    $region46: #{tpu_custom_call.1} parent=1 // pred_check
      _
    $region47: #{tpu_custom_call.1} parent=1 // pred_check_branch
      %100 = sbr.rel (0) target = $region49
    $region48: #{tpu_custom_call.1} parent=1 // pred_region
      %101 = dma.done [#allocation12], 224
    $region49: #{tpu_custom_call.1} parent=1 // pred_fallthru
      _
    %v103 = vld [vmem:[#allocation11] sm:$0x1]
    %v104 = vld [vmem:[#allocation11 + $0x1] sm:$0x3]
    %v105 = vld [vmem:[#allocation11 + $0x3] sm:$0xf]
    %v106 = vld [vmem:[#allocation11 + $0x7] sm:$0xff]
    %v107 = vld [vmem:[#allocation2] sm:$0xff]
    %v108 = vpack.c.bf16 %v107, %v107
    %v109 = vld [vmem:[#allocation5] sm:$0xf]
    %v110 = vld [vmem:[#allocation5 + $0x4] sm:$0xf]
    %v111 = vld [vmem:[#allocation5 + $0x8] sm:$0xf]
    %v112 = vld [vmem:[#allocation5 + $0xc] sm:$0xf]
    %v113 = vld [vmem:[#allocation5 + $0x10] sm:$0xf]
    %v114 = vld [vmem:[#allocation5 + $0x14] sm:$0xf]
    %v115 = vld [vmem:[#allocation5 + $0x18] sm:$0xf]
    %v116 = vld [vmem:[#allocation5 + $0x1c] sm:$0xf]
    %v118 = vlaneseq
    %v119 = vshrl.u32 %v118, 7
    %v120 = vsub.s32 0, %v119
    %v121 = vrot.slane %v103, %v120
    %v131 = vunpack.c.l.b16 %v109
    %v132 = vunpack.c.l.b16 %v110
    %v133 = vunpack.c.l.b16 %v111
    %v134 = vunpack.c.l.b16 %v112
    %v135 = vunpack.c.l.b16 %v113
    %v136 = vunpack.c.l.b16 %v114
    %v137 = vunpack.c.l.b16 %v115
    %v138 = vunpack.c.l.b16 %v116
    %v139 = vpack.c.b16 %v132, %v131
    %v140 = vpack.c.b16 %v134, %v133
    %v141 = vpack.c.b16 %v136, %v135
    %v142 = vpack.c.b16 %v138, %v137
    %vm147 = vcmask 523264
    %v149 = vsel %vm147, %v108, 0
    %151 = vmatprep.subr.bf16.mxu0 0
    %152 = vmatpush1.bf16.msra.mxu0 0
    %153 = vmatprep.subr.bf16.mxu0 0
    %154 = vmatpush1.bf16.msra.mxu0 0
    %155 = vmatprep.subr.bf16.mxu0 0
    %156 = vmatpush1.bf16.msra.mxu0 0
    %157 = vmatprep.subr.bf16.mxu0 0
    %158 = vmatpush1.bf16.msra.mxu0 0
    %159 = vmatprep.subr.bf16.mxu0 0
    %160 = vmatpush1.bf16.msra.mxu0 %v142
    %161 = vmatprep.subr.bf16.mxu0 0
    %162 = vmatpush1.bf16.msra.mxu0 %v141
    %163 = vmatprep.subr.bf16.mxu0 0
    %164 = vmatpush1.bf16.msra.mxu0 %v140
    %165 = vmatprep.subr.bf16.mxu0 0
    %166 = vmatpush1.bf16.msra.mxu0 %v139
    %167 = vmatprep.subr.bf16.mxu0 0
    %168 = vmatpush2.bf16.msra.mxu0 0
    %169 = vmatprep.subr.bf16.mxu0 0
    %170 = vmatpush2.bf16.msra.mxu0 0
    %171 = vmatprep.subr.bf16.mxu0 0
    %172 = vmatpush2.bf16.msra.mxu0 0
    %173 = vmatprep.subr.bf16.mxu0 0
    %174 = vmatpush2.bf16.msra.mxu0 0
    %175 = vmatprep.subr.bf16.mxu0 0
    %176 = vmatpush2.bf16.msra.mxu0 0
    %177 = vmatprep.subr.bf16.mxu0 0
    %178 = vmatpush2.bf16.msra.mxu0 0
    %179 = vmatprep.subr.bf16.mxu0 0
    %180 = vmatpush2.bf16.msra.mxu0 0
    %181 = vmatprep.subr.bf16.mxu0 0
    %182 = vmatpush2.bf16.msra.mxu0 0
    %183 = vmatprep.mubr.bf16.mxu0 0
    %184 = vmatmul.mubr.bf16.gmra.mxu0 %v149
    %v185 = vpop.f32.mrf.mxu0
    %v186 = vadd.f32 %v121, %v185
    %v187 = vpop.f32.mrf.mxu0
    %v188 = vpop.f32.mrf.mxu0
    %v189 = vpop.f32.mrf.mxu0
    %190 = vdwg.mxu0
    %v191 = vmax.f32 %v186, 0.0
    %v192 = vpack.c.bf16 %v191, %v191
    %v193 = vld [vmem:[#allocation7] sm:$0xff]
    %v194 = vld [vmem:[#allocation7 + $0x8] sm:$0xff]
    %v195 = vld [vmem:[#allocation7 + $0x10] sm:$0xff]
    %v196 = vld [vmem:[#allocation7 + $0x18] sm:$0xff]
    %v197 = vld [vmem:[#allocation7 + $0x20] sm:$0xff]
    %v198 = vld [vmem:[#allocation7 + $0x28] sm:$0xff]
    %v199 = vld [vmem:[#allocation7 + $0x30] sm:$0xff]
    %v200 = vld [vmem:[#allocation7 + $0x38] sm:$0xff]
    %v201 = vld [vmem:[#allocation7 + $0x40] sm:$0xff]
    %v202 = vld [vmem:[#allocation7 + $0x48] sm:$0xff]
    %v203 = vld [vmem:[#allocation7 + $0x50] sm:$0xff]
    %v204 = vld [vmem:[#allocation7 + $0x58] sm:$0xff]
    %v205 = vld [vmem:[#allocation7 + $0x60] sm:$0xff]
    %v206 = vld [vmem:[#allocation7 + $0x68] sm:$0xff]
    %v207 = vld [vmem:[#allocation7 + $0x70] sm:$0xff]
    %v208 = vld [vmem:[#allocation7 + $0x78] sm:$0xff]
    %v210 = vlaneseq
    %v211 = vshrl.u32 %v210, 7
    %v212 = vsub.s32 0, %v211
    %v213 = vrot.slane %v104, %v212
    %v214 = vlaneseq
    %v215 = vshrl.u32 %v214, 7
    %v216 = vsub.s32 1, %v215
    %v217 = vrot.slane %v104, %v216
    %v236 = vunpack.c.l.b16 %v193
    %v237 = vunpack.c.h.b16 %v193
    %v238 = vunpack.c.l.b16 %v194
    %v239 = vunpack.c.h.b16 %v194
    %v240 = vunpack.c.l.b16 %v195
    %v241 = vunpack.c.h.b16 %v195
    %v242 = vunpack.c.l.b16 %v196
    %v243 = vunpack.c.h.b16 %v196
    %v244 = vunpack.c.l.b16 %v197
    %v245 = vunpack.c.h.b16 %v197
    %v246 = vunpack.c.l.b16 %v198
    %v247 = vunpack.c.h.b16 %v198
    %v248 = vunpack.c.l.b16 %v199
    %v249 = vunpack.c.h.b16 %v199
    %v250 = vunpack.c.l.b16 %v200
    %v251 = vunpack.c.h.b16 %v200
    %v252 = vunpack.c.l.b16 %v201
    %v253 = vunpack.c.h.b16 %v201
    %v254 = vunpack.c.l.b16 %v202
    %v255 = vunpack.c.h.b16 %v202
    %v256 = vunpack.c.l.b16 %v203
    %v257 = vunpack.c.h.b16 %v203
    %v258 = vunpack.c.l.b16 %v204
    %v259 = vunpack.c.h.b16 %v204
    %v260 = vunpack.c.l.b16 %v205
    %v261 = vunpack.c.h.b16 %v205
    %v262 = vunpack.c.l.b16 %v206
    %v263 = vunpack.c.h.b16 %v206
    %v264 = vunpack.c.l.b16 %v207
    %v265 = vunpack.c.h.b16 %v207
    %v266 = vunpack.c.l.b16 %v208
    %v267 = vunpack.c.h.b16 %v208
    %v268 = vpack.c.b16 %v238, %v236
    %v269 = vpack.c.b16 %v239, %v237
    %v270 = vpack.c.b16 %v242, %v240
    %v271 = vpack.c.b16 %v243, %v241
    %v272 = vpack.c.b16 %v246, %v244
    %v273 = vpack.c.b16 %v247, %v245
    %v274 = vpack.c.b16 %v250, %v248
    %v275 = vpack.c.b16 %v251, %v249
    %v276 = vpack.c.b16 %v254, %v252
    %v277 = vpack.c.b16 %v255, %v253
    %v278 = vpack.c.b16 %v258, %v256
    %v279 = vpack.c.b16 %v259, %v257
    %v280 = vpack.c.b16 %v262, %v260
    %v281 = vpack.c.b16 %v263, %v261
    %v282 = vpack.c.b16 %v266, %v264
    %v283 = vpack.c.b16 %v267, %v265
    %300 = vmatprep.subr.bf16.mxu0 %v283
    %301 = vmatpush1.bf16.msra.mxu0 %v282
    %302 = vmatprep.subr.bf16.mxu0 %v281
    %303 = vmatpush1.bf16.msra.mxu0 %v280
    %304 = vmatprep.subr.bf16.mxu0 %v279
    %305 = vmatpush1.bf16.msra.mxu0 %v278
    %306 = vmatprep.subr.bf16.mxu0 %v277
    %307 = vmatpush1.bf16.msra.mxu0 %v276
    %308 = vmatprep.subr.bf16.mxu0 %v275
    %309 = vmatpush1.bf16.msra.mxu0 %v274
    %310 = vmatprep.subr.bf16.mxu0 %v273
    %311 = vmatpush1.bf16.msra.mxu0 %v272
    %312 = vmatprep.subr.bf16.mxu0 %v271
    %313 = vmatpush1.bf16.msra.mxu0 %v270
    %314 = vmatprep.subr.bf16.mxu0 %v269
    %315 = vmatpush1.bf16.msra.mxu0 %v268
    %316 = vmatprep.subr.bf16.mxu0 0
    %317 = vmatpush2.bf16.msra.mxu0 0
    %318 = vmatprep.subr.bf16.mxu0 0
    %319 = vmatpush2.bf16.msra.mxu0 0
    %320 = vmatprep.subr.bf16.mxu0 0
    %321 = vmatpush2.bf16.msra.mxu0 0
    %322 = vmatprep.subr.bf16.mxu0 0
    %323 = vmatpush2.bf16.msra.mxu0 0
    %324 = vmatprep.subr.bf16.mxu0 0
    %325 = vmatpush2.bf16.msra.mxu0 0
    %326 = vmatprep.subr.bf16.mxu0 0
    %327 = vmatpush2.bf16.msra.mxu0 0
    %328 = vmatprep.subr.bf16.mxu0 0
    %329 = vmatpush2.bf16.msra.mxu0 0
    %330 = vmatprep.subr.bf16.mxu0 0
    %331 = vmatpush2.bf16.msra.mxu0 0
    %332 = vmatprep.mubr.bf16.mxu0 0
    %333 = vmatmul.mubr.bf16.gmra.mxu0 %v192
    %v334 = vpop.f32.mrf.mxu0
    %v335 = vadd.f32 %v213, %v334
    %v336 = vpop.f32.mrf.mxu0
    %v337 = vadd.f32 %v217, %v336
    %v338 = vpop.f32.mrf.mxu0
    %v339 = vpop.f32.mrf.mxu0
    %340 = vdwg.mxu0
    %v341 = vmax.f32 %v335, 0.0
    %v342 = vmax.f32 %v337, 0.0
    %v343 = vpack.c.bf16 %v341, %v341
    %v344 = vpack.c.bf16 %v342, %v342
    %v345 = vld [vmem:[#allocation8] sm:$0xff]
    %v346 = vld [vmem:[#allocation8 + $0x8] sm:$0xff]
    %v347 = vld [vmem:[#allocation8 + $0x10] sm:$0xff]
    %v348 = vld [vmem:[#allocation8 + $0x18] sm:$0xff]
    %v349 = vld [vmem:[#allocation8 + $0x20] sm:$0xff]
    %v350 = vld [vmem:[#allocation8 + $0x28] sm:$0xff]
    %v351 = vld [vmem:[#allocation8 + $0x30] sm:$0xff]
    %v352 = vld [vmem:[#allocation8 + $0x38] sm:$0xff]
    %v353 = vld [vmem:[#allocation8 + $0x40] sm:$0xff]
    %v354 = vld [vmem:[#allocation8 + $0x48] sm:$0xff]
    %v355 = vld [vmem:[#allocation8 + $0x50] sm:$0xff]
    %v356 = vld [vmem:[#allocation8 + $0x58] sm:$0xff]
    %v357 = vld [vmem:[#allocation8 + $0x60] sm:$0xff]
    %v358 = vld [vmem:[#allocation8 + $0x68] sm:$0xff]
    %v359 = vld [vmem:[#allocation8 + $0x70] sm:$0xff]
    %v360 = vld [vmem:[#allocation8 + $0x78] sm:$0xff]
    %v361 = vld [vmem:[#allocation8 + $0x80] sm:$0xff]
    %v362 = vld [vmem:[#allocation8 + $0x88] sm:$0xff]
    %v363 = vld [vmem:[#allocation8 + $0x90] sm:$0xff]
    %v364 = vld [vmem:[#allocation8 + $0x98] sm:$0xff]
    %v365 = vld [vmem:[#allocation8 + $0xa0] sm:$0xff]
    %v366 = vld [vmem:[#allocation8 + $0xa8] sm:$0xff]
    %v367 = vld [vmem:[#allocation8 + $0xb0] sm:$0xff]
    %v368 = vld [vmem:[#allocation8 + $0xb8] sm:$0xff]
    %v369 = vld [vmem:[#allocation8 + $0xc0] sm:$0xff]
    %v370 = vld [vmem:[#allocation8 + $0xc8] sm:$0xff]
    %v371 = vld [vmem:[#allocation8 + $0xd0] sm:$0xff]
    %v372 = vld [vmem:[#allocation8 + $0xd8] sm:$0xff]
    %v373 = vld [vmem:[#allocation8 + $0xe0] sm:$0xff]
    %v374 = vld [vmem:[#allocation8 + $0xe8] sm:$0xff]
    %v375 = vld [vmem:[#allocation8 + $0xf0] sm:$0xff]
    %v376 = vld [vmem:[#allocation8 + $0xf8] sm:$0xff]
    %v377 = vld [vmem:[#allocation8 + $0x100] sm:$0xff]
    %v378 = vld [vmem:[#allocation8 + $0x108] sm:$0xff]
    %v379 = vld [vmem:[#allocation8 + $0x110] sm:$0xff]
    %v380 = vld [vmem:[#allocation8 + $0x118] sm:$0xff]
    %v381 = vld [vmem:[#allocation8 + $0x120] sm:$0xff]
    %v382 = vld [vmem:[#allocation8 + $0x128] sm:$0xff]
    %v383 = vld [vmem:[#allocation8 + $0x130] sm:$0xff]
    %v384 = vld [vmem:[#allocation8 + $0x138] sm:$0xff]
    %v385 = vld [vmem:[#allocation8 + $0x140] sm:$0xff]
    %v386 = vld [vmem:[#allocation8 + $0x148] sm:$0xff]
    %v387 = vld [vmem:[#allocation8 + $0x150] sm:$0xff]
    %v388 = vld [vmem:[#allocation8 + $0x158] sm:$0xff]
    %v389 = vld [vmem:[#allocation8 + $0x160] sm:$0xff]
    %v390 = vld [vmem:[#allocation8 + $0x168] sm:$0xff]
    %v391 = vld [vmem:[#allocation8 + $0x170] sm:$0xff]
    %v392 = vld [vmem:[#allocation8 + $0x178] sm:$0xff]
    %v393 = vld [vmem:[#allocation8 + $0x180] sm:$0xff]
    %v394 = vld [vmem:[#allocation8 + $0x188] sm:$0xff]
    %v395 = vld [vmem:[#allocation8 + $0x190] sm:$0xff]
    %v396 = vld [vmem:[#allocation8 + $0x198] sm:$0xff]
    %v397 = vld [vmem:[#allocation8 + $0x1a0] sm:$0xff]
    %v398 = vld [vmem:[#allocation8 + $0x1a8] sm:$0xff]
    %v399 = vld [vmem:[#allocation8 + $0x1b0] sm:$0xff]
    %v400 = vld [vmem:[#allocation8 + $0x1b8] sm:$0xff]
    %v401 = vld [vmem:[#allocation8 + $0x1c0] sm:$0xff]
    %v402 = vld [vmem:[#allocation8 + $0x1c8] sm:$0xff]
    %v403 = vld [vmem:[#allocation8 + $0x1d0] sm:$0xff]
    %v404 = vld [vmem:[#allocation8 + $0x1d8] sm:$0xff]
    %v405 = vld [vmem:[#allocation8 + $0x1e0] sm:$0xff]
    %v406 = vld [vmem:[#allocation8 + $0x1e8] sm:$0xff]
    %v407 = vld [vmem:[#allocation8 + $0x1f0] sm:$0xff]
    %v408 = vld [vmem:[#allocation8 + $0x1f8] sm:$0xff]
    %v410 = vlaneseq
    %v411 = vshrl.u32 %v410, 7
    %v412 = vsub.s32 0, %v411
    %v413 = vrot.slane %v105, %v412
    %v414 = vlaneseq
    %v415 = vshrl.u32 %v414, 7
    %v416 = vsub.s32 1, %v415
    %v417 = vrot.slane %v105, %v416
    %v418 = vlaneseq
    %v419 = vshrl.u32 %v418, 7
    %v420 = vsub.s32 2, %v419
    %v421 = vrot.slane %v105, %v420
    %v422 = vlaneseq
    %v423 = vshrl.u32 %v422, 7
    %v424 = vsub.s32 3, %v423
    %v425 = vrot.slane %v105, %v424
    %v494 = vunpack.c.l.b16 %v345
    %v495 = vunpack.c.h.b16 %v345
    %v496 = vunpack.c.l.b16 %v346
    %v497 = vunpack.c.h.b16 %v346
    %v498 = vunpack.c.l.b16 %v347
    %v499 = vunpack.c.h.b16 %v347
    %v500 = vunpack.c.l.b16 %v348
    %v501 = vunpack.c.h.b16 %v348
    %v502 = vunpack.c.l.b16 %v349
    %v503 = vunpack.c.h.b16 %v349
    %v504 = vunpack.c.l.b16 %v350
    %v505 = vunpack.c.h.b16 %v350
    %v506 = vunpack.c.l.b16 %v351
    %v507 = vunpack.c.h.b16 %v351
    %v508 = vunpack.c.l.b16 %v352
    %v509 = vunpack.c.h.b16 %v352
    %v510 = vunpack.c.l.b16 %v353
    %v511 = vunpack.c.h.b16 %v353
    %v512 = vunpack.c.l.b16 %v354
    %v513 = vunpack.c.h.b16 %v354
    %v514 = vunpack.c.l.b16 %v355
    %v515 = vunpack.c.h.b16 %v355
    %v516 = vunpack.c.l.b16 %v356
    %v517 = vunpack.c.h.b16 %v356
    %v518 = vunpack.c.l.b16 %v357
    %v519 = vunpack.c.h.b16 %v357
    %v520 = vunpack.c.l.b16 %v358
    %v521 = vunpack.c.h.b16 %v358
    %v522 = vunpack.c.l.b16 %v359
    %v523 = vunpack.c.h.b16 %v359
    %v524 = vunpack.c.l.b16 %v360
    %v525 = vunpack.c.h.b16 %v360
    %v526 = vunpack.c.l.b16 %v361
    %v527 = vunpack.c.h.b16 %v361
    %v528 = vunpack.c.l.b16 %v362
    %v529 = vunpack.c.h.b16 %v362
    %v530 = vunpack.c.l.b16 %v363
    %v531 = vunpack.c.h.b16 %v363
    %v532 = vunpack.c.l.b16 %v364
    %v533 = vunpack.c.h.b16 %v364
    %v534 = vunpack.c.l.b16 %v365
    %v535 = vunpack.c.h.b16 %v365
    %v536 = vunpack.c.l.b16 %v366
    %v537 = vunpack.c.h.b16 %v366
    %v538 = vunpack.c.l.b16 %v367
    %v539 = vunpack.c.h.b16 %v367
    %v540 = vunpack.c.l.b16 %v368
    %v541 = vunpack.c.h.b16 %v368
    %v542 = vunpack.c.l.b16 %v369
    %v543 = vunpack.c.h.b16 %v369
    %v544 = vunpack.c.l.b16 %v370
    %v545 = vunpack.c.h.b16 %v370
    %v546 = vunpack.c.l.b16 %v371
    %v547 = vunpack.c.h.b16 %v371
    %v548 = vunpack.c.l.b16 %v372
    %v549 = vunpack.c.h.b16 %v372
    %v550 = vunpack.c.l.b16 %v373
    %v551 = vunpack.c.h.b16 %v373
    %v552 = vunpack.c.l.b16 %v374
    %v553 = vunpack.c.h.b16 %v374
    %v554 = vunpack.c.l.b16 %v375
    %v555 = vunpack.c.h.b16 %v375
    %v556 = vunpack.c.l.b16 %v376
    %v557 = vunpack.c.h.b16 %v376
    %v558 = vunpack.c.l.b16 %v377
    %v559 = vunpack.c.h.b16 %v377
    %v560 = vunpack.c.l.b16 %v378
    %v561 = vunpack.c.h.b16 %v378
    %v562 = vunpack.c.l.b16 %v379
    %v563 = vunpack.c.h.b16 %v379
    %v564 = vunpack.c.l.b16 %v380
    %v565 = vunpack.c.h.b16 %v380
    %v566 = vunpack.c.l.b16 %v381
    %v567 = vunpack.c.h.b16 %v381
    %v568 = vunpack.c.l.b16 %v382
    %v569 = vunpack.c.h.b16 %v382
    %v570 = vunpack.c.l.b16 %v383
    %v571 = vunpack.c.h.b16 %v383
    %v572 = vunpack.c.l.b16 %v384
    %v573 = vunpack.c.h.b16 %v384
    %v574 = vunpack.c.l.b16 %v385
    %v575 = vunpack.c.h.b16 %v385
    %v576 = vunpack.c.l.b16 %v386
    %v577 = vunpack.c.h.b16 %v386
    %v578 = vunpack.c.l.b16 %v387
    %v579 = vunpack.c.h.b16 %v387
    %v580 = vunpack.c.l.b16 %v388
    %v581 = vunpack.c.h.b16 %v388
    %v582 = vunpack.c.l.b16 %v389
    %v583 = vunpack.c.h.b16 %v389
    %v584 = vunpack.c.l.b16 %v390
    %v585 = vunpack.c.h.b16 %v390
    %v586 = vunpack.c.l.b16 %v391
    %v587 = vunpack.c.h.b16 %v391
    %v588 = vunpack.c.l.b16 %v392
    %v589 = vunpack.c.h.b16 %v392
    %v590 = vunpack.c.l.b16 %v393
    %v591 = vunpack.c.h.b16 %v393
    %v592 = vunpack.c.l.b16 %v394
    %v593 = vunpack.c.h.b16 %v394
    %v594 = vunpack.c.l.b16 %v395
    %v595 = vunpack.c.h.b16 %v395
    %v596 = vunpack.c.l.b16 %v396
    %v597 = vunpack.c.h.b16 %v396
    %v598 = vunpack.c.l.b16 %v397
    %v599 = vunpack.c.h.b16 %v397
    %v600 = vunpack.c.l.b16 %v398
    %v601 = vunpack.c.h.b16 %v398
    %v602 = vunpack.c.l.b16 %v399
    %v603 = vunpack.c.h.b16 %v399
    %v604 = vunpack.c.l.b16 %v400
    %v605 = vunpack.c.h.b16 %v400
    %v606 = vunpack.c.l.b16 %v401
    %v607 = vunpack.c.h.b16 %v401
    %v608 = vunpack.c.l.b16 %v402
    %v609 = vunpack.c.h.b16 %v402
    %v610 = vunpack.c.l.b16 %v403
    %v611 = vunpack.c.h.b16 %v403
    %v612 = vunpack.c.l.b16 %v404
    %v613 = vunpack.c.h.b16 %v404
    %v614 = vunpack.c.l.b16 %v405
    %v615 = vunpack.c.h.b16 %v405
    %v616 = vunpack.c.l.b16 %v406
    %v617 = vunpack.c.h.b16 %v406
    %v618 = vunpack.c.l.b16 %v407
    %v619 = vunpack.c.h.b16 %v407
    %v620 = vunpack.c.l.b16 %v408
    %v621 = vunpack.c.h.b16 %v408
    %v622 = vpack.c.b16 %v498, %v494
    %v623 = vpack.c.b16 %v499, %v495
    %v624 = vpack.c.b16 %v500, %v496
    %v625 = vpack.c.b16 %v501, %v497
    %v626 = vpack.c.b16 %v506, %v502
    %v627 = vpack.c.b16 %v507, %v503
    %v628 = vpack.c.b16 %v508, %v504
    %v629 = vpack.c.b16 %v509, %v505
    %v630 = vpack.c.b16 %v514, %v510
    %v631 = vpack.c.b16 %v515, %v511
    %v632 = vpack.c.b16 %v516, %v512
    %v633 = vpack.c.b16 %v517, %v513
    %v634 = vpack.c.b16 %v522, %v518
    %v635 = vpack.c.b16 %v523, %v519
    %v636 = vpack.c.b16 %v524, %v520
    %v637 = vpack.c.b16 %v525, %v521
    %v638 = vpack.c.b16 %v530, %v526
    %v639 = vpack.c.b16 %v531, %v527
    %v640 = vpack.c.b16 %v532, %v528
    %v641 = vpack.c.b16 %v533, %v529
    %v642 = vpack.c.b16 %v538, %v534
    %v643 = vpack.c.b16 %v539, %v535
    %v644 = vpack.c.b16 %v540, %v536
    %v645 = vpack.c.b16 %v541, %v537
    %v646 = vpack.c.b16 %v546, %v542
    %v647 = vpack.c.b16 %v547, %v543
    %v648 = vpack.c.b16 %v548, %v544
    %v649 = vpack.c.b16 %v549, %v545
    %v650 = vpack.c.b16 %v554, %v550
    %v651 = vpack.c.b16 %v555, %v551
    %v652 = vpack.c.b16 %v556, %v552
    %v653 = vpack.c.b16 %v557, %v553
    %v654 = vpack.c.b16 %v562, %v558
    %v655 = vpack.c.b16 %v563, %v559
    %v656 = vpack.c.b16 %v564, %v560
    %v657 = vpack.c.b16 %v565, %v561
    %v658 = vpack.c.b16 %v570, %v566
    %v659 = vpack.c.b16 %v571, %v567
    %v660 = vpack.c.b16 %v572, %v568
    %v661 = vpack.c.b16 %v573, %v569
    %v662 = vpack.c.b16 %v578, %v574
    %v663 = vpack.c.b16 %v579, %v575
    %v664 = vpack.c.b16 %v580, %v576
    %v665 = vpack.c.b16 %v581, %v577
    %v666 = vpack.c.b16 %v586, %v582
    %v667 = vpack.c.b16 %v587, %v583
    %v668 = vpack.c.b16 %v588, %v584
    %v669 = vpack.c.b16 %v589, %v585
    %v670 = vpack.c.b16 %v594, %v590
    %v671 = vpack.c.b16 %v595, %v591
    %v672 = vpack.c.b16 %v596, %v592
    %v673 = vpack.c.b16 %v597, %v593
    %v674 = vpack.c.b16 %v602, %v598
    %v675 = vpack.c.b16 %v603, %v599
    %v676 = vpack.c.b16 %v604, %v600
    %v677 = vpack.c.b16 %v605, %v601
    %v678 = vpack.c.b16 %v610, %v606
    %v679 = vpack.c.b16 %v611, %v607
    %v680 = vpack.c.b16 %v612, %v608
    %v681 = vpack.c.b16 %v613, %v609
    %v682 = vpack.c.b16 %v618, %v614
    %v683 = vpack.c.b16 %v619, %v615
    %v684 = vpack.c.b16 %v620, %v616
    %v685 = vpack.c.b16 %v621, %v617
    %750 = vmatprep.subr.bf16.mxu0 %v651
    %751 = vmatpush1.bf16.msra.mxu0 %v650
    %752 = vmatprep.subr.bf16.mxu0 %v647
    %753 = vmatpush1.bf16.msra.mxu0 %v646
    %754 = vmatprep.subr.bf16.mxu0 %v643
    %755 = vmatpush1.bf16.msra.mxu0 %v642
    %756 = vmatprep.subr.bf16.mxu0 %v639
    %757 = vmatpush1.bf16.msra.mxu0 %v638
    %758 = vmatprep.subr.bf16.mxu0 %v635
    %759 = vmatpush1.bf16.msra.mxu0 %v634
    %760 = vmatprep.subr.bf16.mxu0 %v631
    %761 = vmatpush1.bf16.msra.mxu0 %v630
    %762 = vmatprep.subr.bf16.mxu0 %v627
    %763 = vmatpush1.bf16.msra.mxu0 %v626
    %764 = vmatprep.subr.bf16.mxu0 %v623
    %765 = vmatpush1.bf16.msra.mxu0 %v622
    %766 = vmatprep.subr.bf16.mxu0 %v683
    %767 = vmatpush2.bf16.msra.mxu0 %v682
    %768 = vmatprep.subr.bf16.mxu0 %v679
    %769 = vmatpush2.bf16.msra.mxu0 %v678
    %770 = vmatprep.subr.bf16.mxu0 %v675
    %771 = vmatpush2.bf16.msra.mxu0 %v674
    %772 = vmatprep.subr.bf16.mxu0 %v671
    %773 = vmatpush2.bf16.msra.mxu0 %v670
    %774 = vmatprep.subr.bf16.mxu0 %v667
    %775 = vmatpush2.bf16.msra.mxu0 %v666
    %776 = vmatprep.subr.bf16.mxu0 %v663
    %777 = vmatpush2.bf16.msra.mxu0 %v662
    %778 = vmatprep.subr.bf16.mxu0 %v659
    %779 = vmatpush2.bf16.msra.mxu0 %v658
    %780 = vmatprep.subr.bf16.mxu0 %v655
    %781 = vmatpush2.bf16.msra.mxu0 %v654
    %782 = vmatprep.mubr.bf16.mxu0 %v344
    %783 = vmatmul.mubr.bf16.gmra.mxu0 %v343
    %v784 = vpop.f32.mrf.mxu0
    %v785 = vadd.f32 %v413, %v784
    %v786 = vpop.f32.mrf.mxu0
    %v787 = vadd.f32 %v417, %v786
    %v788 = vpop.f32.mrf.mxu0
    %v789 = vpop.f32.mrf.mxu0
    %790 = vdwg.mxu0
    %791 = vmatprep.subr.bf16.mxu0 %v653
    %792 = vmatpush1.bf16.msra.mxu0 %v652
    %793 = vmatprep.subr.bf16.mxu0 %v649
    %794 = vmatpush1.bf16.msra.mxu0 %v648
    %795 = vmatprep.subr.bf16.mxu0 %v645
    %796 = vmatpush1.bf16.msra.mxu0 %v644
    %797 = vmatprep.subr.bf16.mxu0 %v641
    %798 = vmatpush1.bf16.msra.mxu0 %v640
    %799 = vmatprep.subr.bf16.mxu0 %v637
    %800 = vmatpush1.bf16.msra.mxu0 %v636
    %801 = vmatprep.subr.bf16.mxu0 %v633
    %802 = vmatpush1.bf16.msra.mxu0 %v632
    %803 = vmatprep.subr.bf16.mxu0 %v629
    %804 = vmatpush1.bf16.msra.mxu0 %v628
    %805 = vmatprep.subr.bf16.mxu0 %v625
    %806 = vmatpush1.bf16.msra.mxu0 %v624
    %807 = vmatprep.subr.bf16.mxu0 %v685
    %808 = vmatpush2.bf16.msra.mxu0 %v684
    %809 = vmatprep.subr.bf16.mxu0 %v681
    %810 = vmatpush2.bf16.msra.mxu0 %v680
    %811 = vmatprep.subr.bf16.mxu0 %v677
    %812 = vmatpush2.bf16.msra.mxu0 %v676
    %813 = vmatprep.subr.bf16.mxu0 %v673
    %814 = vmatpush2.bf16.msra.mxu0 %v672
    %815 = vmatprep.subr.bf16.mxu0 %v669
    %816 = vmatpush2.bf16.msra.mxu0 %v668
    %817 = vmatprep.subr.bf16.mxu0 %v665
    %818 = vmatpush2.bf16.msra.mxu0 %v664
    %819 = vmatprep.subr.bf16.mxu0 %v661
    %820 = vmatpush2.bf16.msra.mxu0 %v660
    %821 = vmatprep.subr.bf16.mxu0 %v657
    %822 = vmatpush2.bf16.msra.mxu0 %v656
    %823 = vmatprep.mubr.bf16.mxu0 %v344
    %824 = vmatmul.mubr.bf16.gmra.mxu0 %v343
    %v825 = vpop.f32.mrf.mxu0
    %v826 = vadd.f32 %v421, %v825
    %v827 = vpop.f32.mrf.mxu0
    %v828 = vadd.f32 %v425, %v827
    %v829 = vpop.f32.mrf.mxu0
    %v830 = vpop.f32.mrf.mxu0
    %831 = vdwg.mxu0
    %v832 = vmax.f32 %v785, 0.0
    %v833 = vmax.f32 %v787, 0.0
    %v834 = vmax.f32 %v826, 0.0
    %v835 = vmax.f32 %v828, 0.0
    %v836 = vpack.c.bf16 %v832, %v832
    %v837 = vpack.c.bf16 %v833, %v833
    %v838 = vpack.c.bf16 %v834, %v834
    %v839 = vpack.c.bf16 %v835, %v835
    %v840 = vld [vmem:[#allocation10] sm:$0xff]
    %v841 = vld [vmem:[#allocation10 + $0x8] sm:$0xff]
    %v842 = vld [vmem:[#allocation10 + $0x10] sm:$0xff]
    %v843 = vld [vmem:[#allocation10 + $0x18] sm:$0xf]
    %v844 = vld [vmem:[#allocation10 + $0x1c] sm:$0xff]
    %v845 = vld [vmem:[#allocation10 + $0x24] sm:$0xff]
    %v846 = vld [vmem:[#allocation10 + $0x2c] sm:$0xff]
    %v847 = vld [vmem:[#allocation10 + $0x34] sm:$0xf]
    %v848 = vld [vmem:[#allocation10 + $0x38] sm:$0xff]
    %v849 = vld [vmem:[#allocation10 + $0x40] sm:$0xff]
    %v850 = vld [vmem:[#allocation10 + $0x48] sm:$0xff]
    %v851 = vld [vmem:[#allocation10 + $0x50] sm:$0xf]
    %v852 = vld [vmem:[#allocation10 + $0x54] sm:$0xff]
    %v853 = vld [vmem:[#allocation10 + $0x5c] sm:$0xff]
    %v854 = vld [vmem:[#allocation10 + $0x64] sm:$0xff]
    %v855 = vld [vmem:[#allocation10 + $0x6c] sm:$0xf]
    %v856 = vld [vmem:[#allocation10 + $0x70] sm:$0xff]
    %v857 = vld [vmem:[#allocation10 + $0x78] sm:$0xff]
    %v858 = vld [vmem:[#allocation10 + $0x80] sm:$0xff]
    %v859 = vld [vmem:[#allocation10 + $0x88] sm:$0xf]
    %v860 = vld [vmem:[#allocation10 + $0x8c] sm:$0xff]
    %v861 = vld [vmem:[#allocation10 + $0x94] sm:$0xff]
    %v862 = vld [vmem:[#allocation10 + $0x9c] sm:$0xff]
    %v863 = vld [vmem:[#allocation10 + $0xa4] sm:$0xf]
    %v864 = vld [vmem:[#allocation10 + $0xa8] sm:$0xff]
    %v865 = vld [vmem:[#allocation10 + $0xb0] sm:$0xff]
    %v866 = vld [vmem:[#allocation10 + $0xb8] sm:$0xff]
    %v867 = vld [vmem:[#allocation10 + $0xc0] sm:$0xf]
    %v868 = vld [vmem:[#allocation10 + $0xc4] sm:$0xff]
    %v869 = vld [vmem:[#allocation10 + $0xcc] sm:$0xff]
    %v870 = vld [vmem:[#allocation10 + $0xd4] sm:$0xff]
    %v871 = vld [vmem:[#allocation10 + $0xdc] sm:$0xf]
    %v872 = vld [vmem:[#allocation10 + $0xe0] sm:$0xff]
    %v873 = vld [vmem:[#allocation10 + $0xe8] sm:$0xff]
    %v874 = vld [vmem:[#allocation10 + $0xf0] sm:$0xff]
    %v875 = vld [vmem:[#allocation10 + $0xf8] sm:$0xf]
    %v876 = vld [vmem:[#allocation10 + $0xfc] sm:$0xff]
    %v877 = vld [vmem:[#allocation10 + $0x104] sm:$0xff]
    %v878 = vld [vmem:[#allocation10 + $0x10c] sm:$0xff]
    %v879 = vld [vmem:[#allocation10 + $0x114] sm:$0xf]
    %v880 = vld [vmem:[#allocation10 + $0x118] sm:$0xff]
    %v881 = vld [vmem:[#allocation10 + $0x120] sm:$0xff]
    %v882 = vld [vmem:[#allocation10 + $0x128] sm:$0xff]
    %v883 = vld [vmem:[#allocation10 + $0x130] sm:$0xf]
    %v884 = vld [vmem:[#allocation10 + $0x134] sm:$0xff]
    %v885 = vld [vmem:[#allocation10 + $0x13c] sm:$0xff]
    %v886 = vld [vmem:[#allocation10 + $0x144] sm:$0xff]
    %v887 = vld [vmem:[#allocation10 + $0x14c] sm:$0xf]
    %v888 = vld [vmem:[#allocation10 + $0x150] sm:$0xff]
    %v889 = vld [vmem:[#allocation10 + $0x158] sm:$0xff]
    %v890 = vld [vmem:[#allocation10 + $0x160] sm:$0xff]
    %v891 = vld [vmem:[#allocation10 + $0x168] sm:$0xf]
    %v892 = vld [vmem:[#allocation10 + $0x16c] sm:$0xff]
    %v893 = vld [vmem:[#allocation10 + $0x174] sm:$0xff]
    %v894 = vld [vmem:[#allocation10 + $0x17c] sm:$0xff]
    %v895 = vld [vmem:[#allocation10 + $0x184] sm:$0xf]
    %v896 = vld [vmem:[#allocation10 + $0x188] sm:$0xff]
    %v897 = vld [vmem:[#allocation10 + $0x190] sm:$0xff]
    %v898 = vld [vmem:[#allocation10 + $0x198] sm:$0xff]
    %v899 = vld [vmem:[#allocation10 + $0x1a0] sm:$0xf]
    %v900 = vld [vmem:[#allocation10 + $0x1a4] sm:$0xff]
    %v901 = vld [vmem:[#allocation10 + $0x1ac] sm:$0xff]
    %v902 = vld [vmem:[#allocation10 + $0x1b4] sm:$0xff]
    %v903 = vld [vmem:[#allocation10 + $0x1bc] sm:$0xf]
    %v904 = vld [vmem:[#allocation10 + $0x1c0] sm:$0xff]
    %v905 = vld [vmem:[#allocation10 + $0x1c8] sm:$0xff]
    %v906 = vld [vmem:[#allocation10 + $0x1d0] sm:$0xff]
    %v907 = vld [vmem:[#allocation10 + $0x1d8] sm:$0xf]
    %v908 = vld [vmem:[#allocation10 + $0x1dc] sm:$0xff]
    %v909 = vld [vmem:[#allocation10 + $0x1e4] sm:$0xff]
    %v910 = vld [vmem:[#allocation10 + $0x1ec] sm:$0xff]
    %v911 = vld [vmem:[#allocation10 + $0x1f4] sm:$0xf]
    %v912 = vld [vmem:[#allocation10 + $0x1f8] sm:$0xff]
    %v913 = vld [vmem:[#allocation10 + $0x200] sm:$0xff]
    %v914 = vld [vmem:[#allocation10 + $0x208] sm:$0xff]
    %v915 = vld [vmem:[#allocation10 + $0x210] sm:$0xf]
    %v916 = vld [vmem:[#allocation10 + $0x214] sm:$0xff]
    %v917 = vld [vmem:[#allocation10 + $0x21c] sm:$0xff]
    %v918 = vld [vmem:[#allocation10 + $0x224] sm:$0xff]
    %v919 = vld [vmem:[#allocation10 + $0x22c] sm:$0xf]
    %v920 = vld [vmem:[#allocation10 + $0x230] sm:$0xff]
    %v921 = vld [vmem:[#allocation10 + $0x238] sm:$0xff]
    %v922 = vld [vmem:[#allocation10 + $0x240] sm:$0xff]
    %v923 = vld [vmem:[#allocation10 + $0x248] sm:$0xf]
    %v924 = vld [vmem:[#allocation10 + $0x24c] sm:$0xff]
    %v925 = vld [vmem:[#allocation10 + $0x254] sm:$0xff]
    %v926 = vld [vmem:[#allocation10 + $0x25c] sm:$0xff]
    %v927 = vld [vmem:[#allocation10 + $0x264] sm:$0xf]
    %v928 = vld [vmem:[#allocation10 + $0x268] sm:$0xff]
    %v929 = vld [vmem:[#allocation10 + $0x270] sm:$0xff]
    %v930 = vld [vmem:[#allocation10 + $0x278] sm:$0xff]
    %v931 = vld [vmem:[#allocation10 + $0x280] sm:$0xf]
    %v932 = vld [vmem:[#allocation10 + $0x284] sm:$0xff]
    %v933 = vld [vmem:[#allocation10 + $0x28c] sm:$0xff]
    %v934 = vld [vmem:[#allocation10 + $0x294] sm:$0xff]
    %v935 = vld [vmem:[#allocation10 + $0x29c] sm:$0xf]
    %v936 = vld [vmem:[#allocation10 + $0x2a0] sm:$0xff]
    %v937 = vld [vmem:[#allocation10 + $0x2a8] sm:$0xff]
    %v938 = vld [vmem:[#allocation10 + $0x2b0] sm:$0xff]
    %v939 = vld [vmem:[#allocation10 + $0x2b8] sm:$0xf]
    %v940 = vld [vmem:[#allocation10 + $0x2bc] sm:$0xff]
    %v941 = vld [vmem:[#allocation10 + $0x2c4] sm:$0xff]
    %v942 = vld [vmem:[#allocation10 + $0x2cc] sm:$0xff]
    %v943 = vld [vmem:[#allocation10 + $0x2d4] sm:$0xf]
    %v944 = vld [vmem:[#allocation10 + $0x2d8] sm:$0xff]
    %v945 = vld [vmem:[#allocation10 + $0x2e0] sm:$0xff]
    %v946 = vld [vmem:[#allocation10 + $0x2e8] sm:$0xff]
    %v947 = vld [vmem:[#allocation10 + $0x2f0] sm:$0xf]
    %v948 = vld [vmem:[#allocation10 + $0x2f4] sm:$0xff]
    %v949 = vld [vmem:[#allocation10 + $0x2fc] sm:$0xff]
    %v950 = vld [vmem:[#allocation10 + $0x304] sm:$0xff]
    %v951 = vld [vmem:[#allocation10 + $0x30c] sm:$0xf]
    %v952 = vld [vmem:[#allocation10 + $0x310] sm:$0xff]
    %v953 = vld [vmem:[#allocation10 + $0x318] sm:$0xff]
    %v954 = vld [vmem:[#allocation10 + $0x320] sm:$0xff]
    %v955 = vld [vmem:[#allocation10 + $0x328] sm:$0xf]
    %v956 = vld [vmem:[#allocation10 + $0x32c] sm:$0xff]
    %v957 = vld [vmem:[#allocation10 + $0x334] sm:$0xff]
    %v958 = vld [vmem:[#allocation10 + $0x33c] sm:$0xff]
    %v959 = vld [vmem:[#allocation10 + $0x344] sm:$0xf]
    %v960 = vld [vmem:[#allocation10 + $0x348] sm:$0xff]
    %v961 = vld [vmem:[#allocation10 + $0x350] sm:$0xff]
    %v962 = vld [vmem:[#allocation10 + $0x358] sm:$0xff]
    %v963 = vld [vmem:[#allocation10 + $0x360] sm:$0xf]
    %v964 = vld [vmem:[#allocation10 + $0x364] sm:$0xff]
    %v965 = vld [vmem:[#allocation10 + $0x36c] sm:$0xff]
    %v966 = vld [vmem:[#allocation10 + $0x374] sm:$0xff]
    %v967 = vld [vmem:[#allocation10 + $0x37c] sm:$0xf]
    %v968 = vld [vmem:[#allocation10 + $0x380] sm:$0xff]
    %v969 = vld [vmem:[#allocation10 + $0x388] sm:$0xff]
    %v970 = vld [vmem:[#allocation10 + $0x390] sm:$0xff]
    %v971 = vld [vmem:[#allocation10 + $0x398] sm:$0xf]
    %v972 = vld [vmem:[#allocation10 + $0x39c] sm:$0xff]
    %v973 = vld [vmem:[#allocation10 + $0x3a4] sm:$0xff]
    %v974 = vld [vmem:[#allocation10 + $0x3ac] sm:$0xff]
    %v975 = vld [vmem:[#allocation10 + $0x3b4] sm:$0xf]
    %v976 = vld [vmem:[#allocation10 + $0x3b8] sm:$0xff]
    %v977 = vld [vmem:[#allocation10 + $0x3c0] sm:$0xff]
    %v978 = vld [vmem:[#allocation10 + $0x3c8] sm:$0xff]
    %v979 = vld [vmem:[#allocation10 + $0x3d0] sm:$0xf]
    %v980 = vld [vmem:[#allocation10 + $0x3d4] sm:$0xff]
    %v981 = vld [vmem:[#allocation10 + $0x3dc] sm:$0xff]
    %v982 = vld [vmem:[#allocation10 + $0x3e4] sm:$0xff]
    %v983 = vld [vmem:[#allocation10 + $0x3ec] sm:$0xf]
    %v984 = vld [vmem:[#allocation10 + $0x3f0] sm:$0xff]
    %v985 = vld [vmem:[#allocation10 + $0x3f8] sm:$0xff]
    %v986 = vld [vmem:[#allocation10 + $0x400] sm:$0xff]
    %v987 = vld [vmem:[#allocation10 + $0x408] sm:$0xf]
    %v988 = vld [vmem:[#allocation10 + $0x40c] sm:$0xff]
    %v989 = vld [vmem:[#allocation10 + $0x414] sm:$0xff]
    %v990 = vld [vmem:[#allocation10 + $0x41c] sm:$0xff]
    %v991 = vld [vmem:[#allocation10 + $0x424] sm:$0xf]
    %v992 = vld [vmem:[#allocation10 + $0x428] sm:$0xff]
    %v993 = vld [vmem:[#allocation10 + $0x430] sm:$0xff]
    %v994 = vld [vmem:[#allocation10 + $0x438] sm:$0xff]
    %v995 = vld [vmem:[#allocation10 + $0x440] sm:$0xf]
    %v996 = vld [vmem:[#allocation10 + $0x444] sm:$0xff]
    %v997 = vld [vmem:[#allocation10 + $0x44c] sm:$0xff]
    %v998 = vld [vmem:[#allocation10 + $0x454] sm:$0xff]
    %v999 = vld [vmem:[#allocation10 + $0x45c] sm:$0xf]
    %v1000 = vld [vmem:[#allocation10 + $0x460] sm:$0xff]
    %v1001 = vld [vmem:[#allocation10 + $0x468] sm:$0xff]
    %v1002 = vld [vmem:[#allocation10 + $0x470] sm:$0xff]
    %v1003 = vld [vmem:[#allocation10 + $0x478] sm:$0xf]
    %v1004 = vld [vmem:[#allocation10 + $0x47c] sm:$0xff]
    %v1005 = vld [vmem:[#allocation10 + $0x484] sm:$0xff]
    %v1006 = vld [vmem:[#allocation10 + $0x48c] sm:$0xff]
    %v1007 = vld [vmem:[#allocation10 + $0x494] sm:$0xf]
    %v1008 = vld [vmem:[#allocation10 + $0x498] sm:$0xff]
    %v1009 = vld [vmem:[#allocation10 + $0x4a0] sm:$0xff]
    %v1010 = vld [vmem:[#allocation10 + $0x4a8] sm:$0xff]
    %v1011 = vld [vmem:[#allocation10 + $0x4b0] sm:$0xf]
    %v1012 = vld [vmem:[#allocation10 + $0x4b4] sm:$0xff]
    %v1013 = vld [vmem:[#allocation10 + $0x4bc] sm:$0xff]
    %v1014 = vld [vmem:[#allocation10 + $0x4c4] sm:$0xff]
    %v1015 = vld [vmem:[#allocation10 + $0x4cc] sm:$0xf]
    %v1016 = vld [vmem:[#allocation10 + $0x4d0] sm:$0xff]
    %v1017 = vld [vmem:[#allocation10 + $0x4d8] sm:$0xff]
    %v1018 = vld [vmem:[#allocation10 + $0x4e0] sm:$0xff]
    %v1019 = vld [vmem:[#allocation10 + $0x4e8] sm:$0xf]
    %v1020 = vld [vmem:[#allocation10 + $0x4ec] sm:$0xff]
    %v1021 = vld [vmem:[#allocation10 + $0x4f4] sm:$0xff]
    %v1022 = vld [vmem:[#allocation10 + $0x4fc] sm:$0xff]
    %v1023 = vld [vmem:[#allocation10 + $0x504] sm:$0xf]
    %v1024 = vld [vmem:[#allocation10 + $0x508] sm:$0xff]
    %v1025 = vld [vmem:[#allocation10 + $0x510] sm:$0xff]
    %v1026 = vld [vmem:[#allocation10 + $0x518] sm:$0xff]
    %v1027 = vld [vmem:[#allocation10 + $0x520] sm:$0xf]
    %v1028 = vld [vmem:[#allocation10 + $0x524] sm:$0xff]
    %v1029 = vld [vmem:[#allocation10 + $0x52c] sm:$0xff]
    %v1030 = vld [vmem:[#allocation10 + $0x534] sm:$0xff]
    %v1031 = vld [vmem:[#allocation10 + $0x53c] sm:$0xf]
    %v1032 = vld [vmem:[#allocation10 + $0x540] sm:$0xff]
    %v1033 = vld [vmem:[#allocation10 + $0x548] sm:$0xff]
    %v1034 = vld [vmem:[#allocation10 + $0x550] sm:$0xff]
    %v1035 = vld [vmem:[#allocation10 + $0x558] sm:$0xf]
    %v1036 = vld [vmem:[#allocation10 + $0x55c] sm:$0xff]
    %v1037 = vld [vmem:[#allocation10 + $0x564] sm:$0xff]
    %v1038 = vld [vmem:[#allocation10 + $0x56c] sm:$0xff]
    %v1039 = vld [vmem:[#allocation10 + $0x574] sm:$0xf]
    %v1040 = vld [vmem:[#allocation10 + $0x578] sm:$0xff]
    %v1041 = vld [vmem:[#allocation10 + $0x580] sm:$0xff]
    %v1042 = vld [vmem:[#allocation10 + $0x588] sm:$0xff]
    %v1043 = vld [vmem:[#allocation10 + $0x590] sm:$0xf]
    %v1044 = vld [vmem:[#allocation10 + $0x594] sm:$0xff]
    %v1045 = vld [vmem:[#allocation10 + $0x59c] sm:$0xff]
    %v1046 = vld [vmem:[#allocation10 + $0x5a4] sm:$0xff]
    %v1047 = vld [vmem:[#allocation10 + $0x5ac] sm:$0xf]
    %v1048 = vld [vmem:[#allocation10 + $0x5b0] sm:$0xff]
    %v1049 = vld [vmem:[#allocation10 + $0x5b8] sm:$0xff]
    %v1050 = vld [vmem:[#allocation10 + $0x5c0] sm:$0xff]
    %v1051 = vld [vmem:[#allocation10 + $0x5c8] sm:$0xf]
    %v1052 = vld [vmem:[#allocation10 + $0x5cc] sm:$0xff]
    %v1053 = vld [vmem:[#allocation10 + $0x5d4] sm:$0xff]
    %v1054 = vld [vmem:[#allocation10 + $0x5dc] sm:$0xff]
    %v1055 = vld [vmem:[#allocation10 + $0x5e4] sm:$0xf]
    %v1056 = vld [vmem:[#allocation10 + $0x5e8] sm:$0xff]
    %v1057 = vld [vmem:[#allocation10 + $0x5f0] sm:$0xff]
    %v1058 = vld [vmem:[#allocation10 + $0x5f8] sm:$0xff]
    %v1059 = vld [vmem:[#allocation10 + $0x600] sm:$0xf]
    %v1060 = vld [vmem:[#allocation10 + $0x604] sm:$0xff]
    %v1061 = vld [vmem:[#allocation10 + $0x60c] sm:$0xff]
    %v1062 = vld [vmem:[#allocation10 + $0x614] sm:$0xff]
    %v1063 = vld [vmem:[#allocation10 + $0x61c] sm:$0xf]
    %v1064 = vld [vmem:[#allocation10 + $0x620] sm:$0xff]
    %v1065 = vld [vmem:[#allocation10 + $0x628] sm:$0xff]
    %v1066 = vld [vmem:[#allocation10 + $0x630] sm:$0xff]
    %v1067 = vld [vmem:[#allocation10 + $0x638] sm:$0xf]
    %v1068 = vld [vmem:[#allocation10 + $0x63c] sm:$0xff]
    %v1069 = vld [vmem:[#allocation10 + $0x644] sm:$0xff]
    %v1070 = vld [vmem:[#allocation10 + $0x64c] sm:$0xff]
    %v1071 = vld [vmem:[#allocation10 + $0x654] sm:$0xf]
    %v1072 = vld [vmem:[#allocation10 + $0x658] sm:$0xff]
    %v1073 = vld [vmem:[#allocation10 + $0x660] sm:$0xff]
    %v1074 = vld [vmem:[#allocation10 + $0x668] sm:$0xff]
    %v1075 = vld [vmem:[#allocation10 + $0x670] sm:$0xf]
    %v1076 = vld [vmem:[#allocation10 + $0x674] sm:$0xff]
    %v1077 = vld [vmem:[#allocation10 + $0x67c] sm:$0xff]
    %v1078 = vld [vmem:[#allocation10 + $0x684] sm:$0xff]
    %v1079 = vld [vmem:[#allocation10 + $0x68c] sm:$0xf]
    %v1080 = vld [vmem:[#allocation10 + $0x690] sm:$0xff]
    %v1081 = vld [vmem:[#allocation10 + $0x698] sm:$0xff]
    %v1082 = vld [vmem:[#allocation10 + $0x6a0] sm:$0xff]
    %v1083 = vld [vmem:[#allocation10 + $0x6a8] sm:$0xf]
    %v1084 = vld [vmem:[#allocation10 + $0x6ac] sm:$0xff]
    %v1085 = vld [vmem:[#allocation10 + $0x6b4] sm:$0xff]
    %v1086 = vld [vmem:[#allocation10 + $0x6bc] sm:$0xff]
    %v1087 = vld [vmem:[#allocation10 + $0x6c4] sm:$0xf]
    %v1088 = vld [vmem:[#allocation10 + $0x6c8] sm:$0xff]
    %v1089 = vld [vmem:[#allocation10 + $0x6d0] sm:$0xff]
    %v1090 = vld [vmem:[#allocation10 + $0x6d8] sm:$0xff]
    %v1091 = vld [vmem:[#allocation10 + $0x6e0] sm:$0xf]
    %v1092 = vld [vmem:[#allocation10 + $0x6e4] sm:$0xff]
    %v1093 = vld [vmem:[#allocation10 + $0x6ec] sm:$0xff]
    %v1094 = vld [vmem:[#allocation10 + $0x6f4] sm:$0xff]
    %v1095 = vld [vmem:[#allocation10 + $0x6fc] sm:$0xf]
    %v1097 = vlaneseq
    %v1098 = vshrl.u32 %v1097, 7
    %v1099 = vsub.s32 0, %v1098
    %v1100 = vrot.slane %v106, %v1099
    %v1101 = vlaneseq
    %v1102 = vshrl.u32 %v1101, 7
    %v1103 = vsub.s32 1, %v1102
    %v1104 = vrot.slane %v106, %v1103
    %v1105 = vlaneseq
    %v1106 = vshrl.u32 %v1105, 7
    %v1107 = vsub.s32 2, %v1106
    %v1108 = vrot.slane %v106, %v1107
    %v1109 = vlaneseq
    %v1110 = vshrl.u32 %v1109, 7
    %v1111 = vsub.s32 3, %v1110
    %v1112 = vrot.slane %v106, %v1111
    %v1113 = vlaneseq
    %v1114 = vshrl.u32 %v1113, 7
    %v1115 = vsub.s32 4, %v1114
    %v1116 = vrot.slane %v106, %v1115
    %v1117 = vlaneseq
    %v1118 = vshrl.u32 %v1117, 7
    %v1119 = vsub.s32 5, %v1118
    %v1120 = vrot.slane %v106, %v1119
    %v1121 = vlaneseq
    %v1122 = vshrl.u32 %v1121, 7
    %v1123 = vsub.s32 6, %v1122
    %v1124 = vrot.slane %v106, %v1123
    %v1388 = vunpack.c.l.b16 %v840
    %v1389 = vunpack.c.h.b16 %v840
    %v1390 = vunpack.c.l.b16 %v841
    %v1391 = vunpack.c.h.b16 %v841
    %v1392 = vunpack.c.l.b16 %v842
    %v1393 = vunpack.c.h.b16 %v842
    %v1394 = vunpack.c.l.b16 %v843
    %v1395 = vunpack.c.l.b16 %v844
    %v1396 = vunpack.c.h.b16 %v844
    %v1397 = vunpack.c.l.b16 %v845
    %v1398 = vunpack.c.h.b16 %v845
    %v1399 = vunpack.c.l.b16 %v846
    %v1400 = vunpack.c.h.b16 %v846
    %v1401 = vunpack.c.l.b16 %v847
    %v1402 = vunpack.c.l.b16 %v848
    %v1403 = vunpack.c.h.b16 %v848
    %v1404 = vunpack.c.l.b16 %v849
    %v1405 = vunpack.c.h.b16 %v849
    %v1406 = vunpack.c.l.b16 %v850
    %v1407 = vunpack.c.h.b16 %v850
    %v1408 = vunpack.c.l.b16 %v851
    %v1409 = vunpack.c.l.b16 %v852
    %v1410 = vunpack.c.h.b16 %v852
    %v1411 = vunpack.c.l.b16 %v853
    %v1412 = vunpack.c.h.b16 %v853
    %v1413 = vunpack.c.l.b16 %v854
    %v1414 = vunpack.c.h.b16 %v854
    %v1415 = vunpack.c.l.b16 %v855
    %v1416 = vunpack.c.l.b16 %v856
    %v1417 = vunpack.c.h.b16 %v856
    %v1418 = vunpack.c.l.b16 %v857
    %v1419 = vunpack.c.h.b16 %v857
    %v1420 = vunpack.c.l.b16 %v858
    %v1421 = vunpack.c.h.b16 %v858
    %v1422 = vunpack.c.l.b16 %v859
    %v1423 = vunpack.c.l.b16 %v860
    %v1424 = vunpack.c.h.b16 %v860
    %v1425 = vunpack.c.l.b16 %v861
    %v1426 = vunpack.c.h.b16 %v861
    %v1427 = vunpack.c.l.b16 %v862
    %v1428 = vunpack.c.h.b16 %v862
    %v1429 = vunpack.c.l.b16 %v863
    %v1430 = vunpack.c.l.b16 %v864
    %v1431 = vunpack.c.h.b16 %v864
    %v1432 = vunpack.c.l.b16 %v865
    %v1433 = vunpack.c.h.b16 %v865
    %v1434 = vunpack.c.l.b16 %v866
    %v1435 = vunpack.c.h.b16 %v866
    %v1436 = vunpack.c.l.b16 %v867
    %v1437 = vunpack.c.l.b16 %v868
    %v1438 = vunpack.c.h.b16 %v868
    %v1439 = vunpack.c.l.b16 %v869
    %v1440 = vunpack.c.h.b16 %v869
    %v1441 = vunpack.c.l.b16 %v870
    %v1442 = vunpack.c.h.b16 %v870
    %v1443 = vunpack.c.l.b16 %v871
    %v1444 = vunpack.c.l.b16 %v872
    %v1445 = vunpack.c.h.b16 %v872
    %v1446 = vunpack.c.l.b16 %v873
    %v1447 = vunpack.c.h.b16 %v873
    %v1448 = vunpack.c.l.b16 %v874
    %v1449 = vunpack.c.h.b16 %v874
    %v1450 = vunpack.c.l.b16 %v875
    %v1451 = vunpack.c.l.b16 %v876
    %v1452 = vunpack.c.h.b16 %v876
    %v1453 = vunpack.c.l.b16 %v877
    %v1454 = vunpack.c.h.b16 %v877
    %v1455 = vunpack.c.l.b16 %v878
    %v1456 = vunpack.c.h.b16 %v878
    %v1457 = vunpack.c.l.b16 %v879
    %v1458 = vunpack.c.l.b16 %v880
    %v1459 = vunpack.c.h.b16 %v880
    %v1460 = vunpack.c.l.b16 %v881
    %v1461 = vunpack.c.h.b16 %v881
    %v1462 = vunpack.c.l.b16 %v882
    %v1463 = vunpack.c.h.b16 %v882
    %v1464 = vunpack.c.l.b16 %v883
    %v1465 = vunpack.c.l.b16 %v884
    %v1466 = vunpack.c.h.b16 %v884
    %v1467 = vunpack.c.l.b16 %v885
    %v1468 = vunpack.c.h.b16 %v885
    %v1469 = vunpack.c.l.b16 %v886
    %v1470 = vunpack.c.h.b16 %v886
    %v1471 = vunpack.c.l.b16 %v887
    %v1472 = vunpack.c.l.b16 %v888
    %v1473 = vunpack.c.h.b16 %v888
    %v1474 = vunpack.c.l.b16 %v889
    %v1475 = vunpack.c.h.b16 %v889
    %v1476 = vunpack.c.l.b16 %v890
    %v1477 = vunpack.c.h.b16 %v890
    %v1478 = vunpack.c.l.b16 %v891
    %v1479 = vunpack.c.l.b16 %v892
    %v1480 = vunpack.c.h.b16 %v892
    %v1481 = vunpack.c.l.b16 %v893
    %v1482 = vunpack.c.h.b16 %v893
    %v1483 = vunpack.c.l.b16 %v894
    %v1484 = vunpack.c.h.b16 %v894
    %v1485 = vunpack.c.l.b16 %v895
    %v1486 = vunpack.c.l.b16 %v896
    %v1487 = vunpack.c.h.b16 %v896
    %v1488 = vunpack.c.l.b16 %v897
    %v1489 = vunpack.c.h.b16 %v897
    %v1490 = vunpack.c.l.b16 %v898
    %v1491 = vunpack.c.h.b16 %v898
    %v1492 = vunpack.c.l.b16 %v899
    %v1493 = vunpack.c.l.b16 %v900
    %v1494 = vunpack.c.h.b16 %v900
    %v1495 = vunpack.c.l.b16 %v901
    %v1496 = vunpack.c.h.b16 %v901
    %v1497 = vunpack.c.l.b16 %v902
    %v1498 = vunpack.c.h.b16 %v902
    %v1499 = vunpack.c.l.b16 %v903
    %v1500 = vunpack.c.l.b16 %v904
    %v1501 = vunpack.c.h.b16 %v904
    %v1502 = vunpack.c.l.b16 %v905
    %v1503 = vunpack.c.h.b16 %v905
    %v1504 = vunpack.c.l.b16 %v906
    %v1505 = vunpack.c.h.b16 %v906
    %v1506 = vunpack.c.l.b16 %v907
    %v1507 = vunpack.c.l.b16 %v908
    %v1508 = vunpack.c.h.b16 %v908
    %v1509 = vunpack.c.l.b16 %v909
    %v1510 = vunpack.c.h.b16 %v909
    %v1511 = vunpack.c.l.b16 %v910
    %v1512 = vunpack.c.h.b16 %v910
    %v1513 = vunpack.c.l.b16 %v911
    %v1514 = vunpack.c.l.b16 %v912
    %v1515 = vunpack.c.h.b16 %v912
    %v1516 = vunpack.c.l.b16 %v913
    %v1517 = vunpack.c.h.b16 %v913
    %v1518 = vunpack.c.l.b16 %v914
    %v1519 = vunpack.c.h.b16 %v914
    %v1520 = vunpack.c.l.b16 %v915
    %v1521 = vunpack.c.l.b16 %v916
    %v1522 = vunpack.c.h.b16 %v916
    %v1523 = vunpack.c.l.b16 %v917
    %v1524 = vunpack.c.h.b16 %v917
    %v1525 = vunpack.c.l.b16 %v918
    %v1526 = vunpack.c.h.b16 %v918
    %v1527 = vunpack.c.l.b16 %v919
    %v1528 = vunpack.c.l.b16 %v920
    %v1529 = vunpack.c.h.b16 %v920
    %v1530 = vunpack.c.l.b16 %v921
    %v1531 = vunpack.c.h.b16 %v921
    %v1532 = vunpack.c.l.b16 %v922
    %v1533 = vunpack.c.h.b16 %v922
    %v1534 = vunpack.c.l.b16 %v923
    %v1535 = vunpack.c.l.b16 %v924
    %v1536 = vunpack.c.h.b16 %v924
    %v1537 = vunpack.c.l.b16 %v925
    %v1538 = vunpack.c.h.b16 %v925
    %v1539 = vunpack.c.l.b16 %v926
    %v1540 = vunpack.c.h.b16 %v926
    %v1541 = vunpack.c.l.b16 %v927
    %v1542 = vunpack.c.l.b16 %v928
    %v1543 = vunpack.c.h.b16 %v928
    %v1544 = vunpack.c.l.b16 %v929
    %v1545 = vunpack.c.h.b16 %v929
    %v1546 = vunpack.c.l.b16 %v930
    %v1547 = vunpack.c.h.b16 %v930
    %v1548 = vunpack.c.l.b16 %v931
    %v1549 = vunpack.c.l.b16 %v932
    %v1550 = vunpack.c.h.b16 %v932
    %v1551 = vunpack.c.l.b16 %v933
    %v1552 = vunpack.c.h.b16 %v933
    %v1553 = vunpack.c.l.b16 %v934
    %v1554 = vunpack.c.h.b16 %v934
    %v1555 = vunpack.c.l.b16 %v935
    %v1556 = vunpack.c.l.b16 %v936
    %v1557 = vunpack.c.h.b16 %v936
    %v1558 = vunpack.c.l.b16 %v937
    %v1559 = vunpack.c.h.b16 %v937
    %v1560 = vunpack.c.l.b16 %v938
    %v1561 = vunpack.c.h.b16 %v938
    %v1562 = vunpack.c.l.b16 %v939
    %v1563 = vunpack.c.l.b16 %v940
    %v1564 = vunpack.c.h.b16 %v940
    %v1565 = vunpack.c.l.b16 %v941
    %v1566 = vunpack.c.h.b16 %v941
    %v1567 = vunpack.c.l.b16 %v942
    %v1568 = vunpack.c.h.b16 %v942
    %v1569 = vunpack.c.l.b16 %v943
    %v1570 = vunpack.c.l.b16 %v944
    %v1571 = vunpack.c.h.b16 %v944
    %v1572 = vunpack.c.l.b16 %v945
    %v1573 = vunpack.c.h.b16 %v945
    %v1574 = vunpack.c.l.b16 %v946
    %v1575 = vunpack.c.h.b16 %v946
    %v1576 = vunpack.c.l.b16 %v947
    %v1577 = vunpack.c.l.b16 %v948
    %v1578 = vunpack.c.h.b16 %v948
    %v1579 = vunpack.c.l.b16 %v949
    %v1580 = vunpack.c.h.b16 %v949
    %v1581 = vunpack.c.l.b16 %v950
    %v1582 = vunpack.c.h.b16 %v950
    %v1583 = vunpack.c.l.b16 %v951
    %v1584 = vunpack.c.l.b16 %v952
    %v1585 = vunpack.c.h.b16 %v952
    %v1586 = vunpack.c.l.b16 %v953
    %v1587 = vunpack.c.h.b16 %v953
    %v1588 = vunpack.c.l.b16 %v954
    %v1589 = vunpack.c.h.b16 %v954
    %v1590 = vunpack.c.l.b16 %v955
    %v1591 = vunpack.c.l.b16 %v956
    %v1592 = vunpack.c.h.b16 %v956
    %v1593 = vunpack.c.l.b16 %v957
    %v1594 = vunpack.c.h.b16 %v957
    %v1595 = vunpack.c.l.b16 %v958
    %v1596 = vunpack.c.h.b16 %v958
    %v1597 = vunpack.c.l.b16 %v959
    %v1598 = vunpack.c.l.b16 %v960
    %v1599 = vunpack.c.h.b16 %v960
    %v1600 = vunpack.c.l.b16 %v961
    %v1601 = vunpack.c.h.b16 %v961
    %v1602 = vunpack.c.l.b16 %v962
    %v1603 = vunpack.c.h.b16 %v962
    %v1604 = vunpack.c.l.b16 %v963
    %v1605 = vunpack.c.l.b16 %v964
    %v1606 = vunpack.c.h.b16 %v964
    %v1607 = vunpack.c.l.b16 %v965
    %v1608 = vunpack.c.h.b16 %v965
    %v1609 = vunpack.c.l.b16 %v966
    %v1610 = vunpack.c.h.b16 %v966
    %v1611 = vunpack.c.l.b16 %v967
    %v1612 = vunpack.c.l.b16 %v968
    %v1613 = vunpack.c.h.b16 %v968
    %v1614 = vunpack.c.l.b16 %v969
    %v1615 = vunpack.c.h.b16 %v969
    %v1616 = vunpack.c.l.b16 %v970
    %v1617 = vunpack.c.h.b16 %v970
    %v1618 = vunpack.c.l.b16 %v971
    %v1619 = vunpack.c.l.b16 %v972
    %v1620 = vunpack.c.h.b16 %v972
    %v1621 = vunpack.c.l.b16 %v973
    %v1622 = vunpack.c.h.b16 %v973
    %v1623 = vunpack.c.l.b16 %v974
    %v1624 = vunpack.c.h.b16 %v974
    %v1625 = vunpack.c.l.b16 %v975
    %v1626 = vunpack.c.l.b16 %v976
    %v1627 = vunpack.c.h.b16 %v976
    %v1628 = vunpack.c.l.b16 %v977
    %v1629 = vunpack.c.h.b16 %v977
    %v1630 = vunpack.c.l.b16 %v978
    %v1631 = vunpack.c.h.b16 %v978
    %v1632 = vunpack.c.l.b16 %v979
    %v1633 = vunpack.c.l.b16 %v980
    %v1634 = vunpack.c.h.b16 %v980
    %v1635 = vunpack.c.l.b16 %v981
    %v1636 = vunpack.c.h.b16 %v981
    %v1637 = vunpack.c.l.b16 %v982
    %v1638 = vunpack.c.h.b16 %v982
    %v1639 = vunpack.c.l.b16 %v983
    %v1640 = vunpack.c.l.b16 %v984
    %v1641 = vunpack.c.h.b16 %v984
    %v1642 = vunpack.c.l.b16 %v985
    %v1643 = vunpack.c.h.b16 %v985
    %v1644 = vunpack.c.l.b16 %v986
    %v1645 = vunpack.c.h.b16 %v986
    %v1646 = vunpack.c.l.b16 %v987
    %v1647 = vunpack.c.l.b16 %v988
    %v1648 = vunpack.c.h.b16 %v988
    %v1649 = vunpack.c.l.b16 %v989
    %v1650 = vunpack.c.h.b16 %v989
    %v1651 = vunpack.c.l.b16 %v990
    %v1652 = vunpack.c.h.b16 %v990
    %v1653 = vunpack.c.l.b16 %v991
    %v1654 = vunpack.c.l.b16 %v992
    %v1655 = vunpack.c.h.b16 %v992
    %v1656 = vunpack.c.l.b16 %v993
    %v1657 = vunpack.c.h.b16 %v993
    %v1658 = vunpack.c.l.b16 %v994
    %v1659 = vunpack.c.h.b16 %v994
    %v1660 = vunpack.c.l.b16 %v995
    %v1661 = vunpack.c.l.b16 %v996
    %v1662 = vunpack.c.h.b16 %v996
    %v1663 = vunpack.c.l.b16 %v997
    %v1664 = vunpack.c.h.b16 %v997
    %v1665 = vunpack.c.l.b16 %v998
    %v1666 = vunpack.c.h.b16 %v998
    %v1667 = vunpack.c.l.b16 %v999
    %v1668 = vunpack.c.l.b16 %v1000
    %v1669 = vunpack.c.h.b16 %v1000
    %v1670 = vunpack.c.l.b16 %v1001
    %v1671 = vunpack.c.h.b16 %v1001
    %v1672 = vunpack.c.l.b16 %v1002
    %v1673 = vunpack.c.h.b16 %v1002
    %v1674 = vunpack.c.l.b16 %v1003
    %v1675 = vunpack.c.l.b16 %v1004
    %v1676 = vunpack.c.h.b16 %v1004
    %v1677 = vunpack.c.l.b16 %v1005
    %v1678 = vunpack.c.h.b16 %v1005
    %v1679 = vunpack.c.l.b16 %v1006
    %v1680 = vunpack.c.h.b16 %v1006
    %v1681 = vunpack.c.l.b16 %v1007
    %v1682 = vunpack.c.l.b16 %v1008
    %v1683 = vunpack.c.h.b16 %v1008
    %v1684 = vunpack.c.l.b16 %v1009
    %v1685 = vunpack.c.h.b16 %v1009
    %v1686 = vunpack.c.l.b16 %v1010
    %v1687 = vunpack.c.h.b16 %v1010
    %v1688 = vunpack.c.l.b16 %v1011
    %v1689 = vunpack.c.l.b16 %v1012
    %v1690 = vunpack.c.h.b16 %v1012
    %v1691 = vunpack.c.l.b16 %v1013
    %v1692 = vunpack.c.h.b16 %v1013
    %v1693 = vunpack.c.l.b16 %v1014
    %v1694 = vunpack.c.h.b16 %v1014
    %v1695 = vunpack.c.l.b16 %v1015
    %v1696 = vunpack.c.l.b16 %v1016
    %v1697 = vunpack.c.h.b16 %v1016
    %v1698 = vunpack.c.l.b16 %v1017
    %v1699 = vunpack.c.h.b16 %v1017
    %v1700 = vunpack.c.l.b16 %v1018
    %v1701 = vunpack.c.h.b16 %v1018
    %v1702 = vunpack.c.l.b16 %v1019
    %v1703 = vunpack.c.l.b16 %v1020
    %v1704 = vunpack.c.h.b16 %v1020
    %v1705 = vunpack.c.l.b16 %v1021
    %v1706 = vunpack.c.h.b16 %v1021
    %v1707 = vunpack.c.l.b16 %v1022
    %v1708 = vunpack.c.h.b16 %v1022
    %v1709 = vunpack.c.l.b16 %v1023
    %v1710 = vunpack.c.l.b16 %v1024
    %v1711 = vunpack.c.h.b16 %v1024
    %v1712 = vunpack.c.l.b16 %v1025
    %v1713 = vunpack.c.h.b16 %v1025
    %v1714 = vunpack.c.l.b16 %v1026
    %v1715 = vunpack.c.h.b16 %v1026
    %v1716 = vunpack.c.l.b16 %v1027
    %v1717 = vunpack.c.l.b16 %v1028
    %v1718 = vunpack.c.h.b16 %v1028
    %v1719 = vunpack.c.l.b16 %v1029
    %v1720 = vunpack.c.h.b16 %v1029
    %v1721 = vunpack.c.l.b16 %v1030
    %v1722 = vunpack.c.h.b16 %v1030
    %v1723 = vunpack.c.l.b16 %v1031
    %v1724 = vunpack.c.l.b16 %v1032
    %v1725 = vunpack.c.h.b16 %v1032
    %v1726 = vunpack.c.l.b16 %v1033
    %v1727 = vunpack.c.h.b16 %v1033
    %v1728 = vunpack.c.l.b16 %v1034
    %v1729 = vunpack.c.h.b16 %v1034
    %v1730 = vunpack.c.l.b16 %v1035
    %v1731 = vunpack.c.l.b16 %v1036
    %v1732 = vunpack.c.h.b16 %v1036
    %v1733 = vunpack.c.l.b16 %v1037
    %v1734 = vunpack.c.h.b16 %v1037
    %v1735 = vunpack.c.l.b16 %v1038
    %v1736 = vunpack.c.h.b16 %v1038
    %v1737 = vunpack.c.l.b16 %v1039
    %v1738 = vunpack.c.l.b16 %v1040
    %v1739 = vunpack.c.h.b16 %v1040
    %v1740 = vunpack.c.l.b16 %v1041
    %v1741 = vunpack.c.h.b16 %v1041
    %v1742 = vunpack.c.l.b16 %v1042
    %v1743 = vunpack.c.h.b16 %v1042
    %v1744 = vunpack.c.l.b16 %v1043
    %v1745 = vunpack.c.l.b16 %v1044
    %v1746 = vunpack.c.h.b16 %v1044
    %v1747 = vunpack.c.l.b16 %v1045
    %v1748 = vunpack.c.h.b16 %v1045
    %v1749 = vunpack.c.l.b16 %v1046
    %v1750 = vunpack.c.h.b16 %v1046
    %v1751 = vunpack.c.l.b16 %v1047
    %v1752 = vunpack.c.l.b16 %v1048
    %v1753 = vunpack.c.h.b16 %v1048
    %v1754 = vunpack.c.l.b16 %v1049
    %v1755 = vunpack.c.h.b16 %v1049
    %v1756 = vunpack.c.l.b16 %v1050
    %v1757 = vunpack.c.h.b16 %v1050
    %v1758 = vunpack.c.l.b16 %v1051
    %v1759 = vunpack.c.l.b16 %v1052
    %v1760 = vunpack.c.h.b16 %v1052
    %v1761 = vunpack.c.l.b16 %v1053
    %v1762 = vunpack.c.h.b16 %v1053
    %v1763 = vunpack.c.l.b16 %v1054
    %v1764 = vunpack.c.h.b16 %v1054
    %v1765 = vunpack.c.l.b16 %v1055
    %v1766 = vunpack.c.l.b16 %v1056
    %v1767 = vunpack.c.h.b16 %v1056
    %v1768 = vunpack.c.l.b16 %v1057
    %v1769 = vunpack.c.h.b16 %v1057
    %v1770 = vunpack.c.l.b16 %v1058
    %v1771 = vunpack.c.h.b16 %v1058
    %v1772 = vunpack.c.l.b16 %v1059
    %v1773 = vunpack.c.l.b16 %v1060
    %v1774 = vunpack.c.h.b16 %v1060
    %v1775 = vunpack.c.l.b16 %v1061
    %v1776 = vunpack.c.h.b16 %v1061
    %v1777 = vunpack.c.l.b16 %v1062
    %v1778 = vunpack.c.h.b16 %v1062
    %v1779 = vunpack.c.l.b16 %v1063
    %v1780 = vunpack.c.l.b16 %v1064
    %v1781 = vunpack.c.h.b16 %v1064
    %v1782 = vunpack.c.l.b16 %v1065
    %v1783 = vunpack.c.h.b16 %v1065
    %v1784 = vunpack.c.l.b16 %v1066
    %v1785 = vunpack.c.h.b16 %v1066
    %v1786 = vunpack.c.l.b16 %v1067
    %v1787 = vunpack.c.l.b16 %v1068
    %v1788 = vunpack.c.h.b16 %v1068
    %v1789 = vunpack.c.l.b16 %v1069
    %v1790 = vunpack.c.h.b16 %v1069
    %v1791 = vunpack.c.l.b16 %v1070
    %v1792 = vunpack.c.h.b16 %v1070
    %v1793 = vunpack.c.l.b16 %v1071
    %v1794 = vunpack.c.l.b16 %v1072
    %v1795 = vunpack.c.h.b16 %v1072
    %v1796 = vunpack.c.l.b16 %v1073
    %v1797 = vunpack.c.h.b16 %v1073
    %v1798 = vunpack.c.l.b16 %v1074
    %v1799 = vunpack.c.h.b16 %v1074
    %v1800 = vunpack.c.l.b16 %v1075
    %v1801 = vunpack.c.l.b16 %v1076
    %v1802 = vunpack.c.h.b16 %v1076
    %v1803 = vunpack.c.l.b16 %v1077
    %v1804 = vunpack.c.h.b16 %v1077
    %v1805 = vunpack.c.l.b16 %v1078
    %v1806 = vunpack.c.h.b16 %v1078
    %v1807 = vunpack.c.l.b16 %v1079
    %v1808 = vunpack.c.l.b16 %v1080
    %v1809 = vunpack.c.h.b16 %v1080
    %v1810 = vunpack.c.l.b16 %v1081
    %v1811 = vunpack.c.h.b16 %v1081
    %v1812 = vunpack.c.l.b16 %v1082
    %v1813 = vunpack.c.h.b16 %v1082
    %v1814 = vunpack.c.l.b16 %v1083
    %v1815 = vunpack.c.l.b16 %v1084
    %v1816 = vunpack.c.h.b16 %v1084
    %v1817 = vunpack.c.l.b16 %v1085
    %v1818 = vunpack.c.h.b16 %v1085
    %v1819 = vunpack.c.l.b16 %v1086
    %v1820 = vunpack.c.h.b16 %v1086
    %v1821 = vunpack.c.l.b16 %v1087
    %v1822 = vunpack.c.l.b16 %v1088
    %v1823 = vunpack.c.h.b16 %v1088
    %v1824 = vunpack.c.l.b16 %v1089
    %v1825 = vunpack.c.h.b16 %v1089
    %v1826 = vunpack.c.l.b16 %v1090
    %v1827 = vunpack.c.h.b16 %v1090
    %v1828 = vunpack.c.l.b16 %v1091
    %v1829 = vunpack.c.l.b16 %v1092
    %v1830 = vunpack.c.h.b16 %v1092
    %v1831 = vunpack.c.l.b16 %v1093
    %v1832 = vunpack.c.h.b16 %v1093
    %v1833 = vunpack.c.l.b16 %v1094
    %v1834 = vunpack.c.h.b16 %v1094
    %v1835 = vunpack.c.l.b16 %v1095
    %v1836 = vpack.c.b16 %v1395, %v1388
    %v1837 = vpack.c.b16 %v1396, %v1389
    %v1838 = vpack.c.b16 %v1397, %v1390
    %v1839 = vpack.c.b16 %v1398, %v1391
    %v1840 = vpack.c.b16 %v1399, %v1392
    %v1841 = vpack.c.b16 %v1400, %v1393
    %v1842 = vpack.c.b16 %v1401, %v1394
    %v1843 = vpack.c.b16 %v1409, %v1402
    %v1844 = vpack.c.b16 %v1410, %v1403
    %v1845 = vpack.c.b16 %v1411, %v1404
    %v1846 = vpack.c.b16 %v1412, %v1405
    %v1847 = vpack.c.b16 %v1413, %v1406
    %v1848 = vpack.c.b16 %v1414, %v1407
    %v1849 = vpack.c.b16 %v1415, %v1408
    %v1850 = vpack.c.b16 %v1423, %v1416
    %v1851 = vpack.c.b16 %v1424, %v1417
    %v1852 = vpack.c.b16 %v1425, %v1418
    %v1853 = vpack.c.b16 %v1426, %v1419
    %v1854 = vpack.c.b16 %v1427, %v1420
    %v1855 = vpack.c.b16 %v1428, %v1421
    %v1856 = vpack.c.b16 %v1429, %v1422
    %v1857 = vpack.c.b16 %v1437, %v1430
    %v1858 = vpack.c.b16 %v1438, %v1431
    %v1859 = vpack.c.b16 %v1439, %v1432
    %v1860 = vpack.c.b16 %v1440, %v1433
    %v1861 = vpack.c.b16 %v1441, %v1434
    %v1862 = vpack.c.b16 %v1442, %v1435
    %v1863 = vpack.c.b16 %v1443, %v1436
    %v1864 = vpack.c.b16 %v1451, %v1444
    %v1865 = vpack.c.b16 %v1452, %v1445
    %v1866 = vpack.c.b16 %v1453, %v1446
    %v1867 = vpack.c.b16 %v1454, %v1447
    %v1868 = vpack.c.b16 %v1455, %v1448
    %v1869 = vpack.c.b16 %v1456, %v1449
    %v1870 = vpack.c.b16 %v1457, %v1450
    %v1871 = vpack.c.b16 %v1465, %v1458
    %v1872 = vpack.c.b16 %v1466, %v1459
    %v1873 = vpack.c.b16 %v1467, %v1460
    %v1874 = vpack.c.b16 %v1468, %v1461
    %v1875 = vpack.c.b16 %v1469, %v1462
    %v1876 = vpack.c.b16 %v1470, %v1463
    %v1877 = vpack.c.b16 %v1471, %v1464
    %v1878 = vpack.c.b16 %v1479, %v1472
    %v1879 = vpack.c.b16 %v1480, %v1473
    %v1880 = vpack.c.b16 %v1481, %v1474
    %v1881 = vpack.c.b16 %v1482, %v1475
    %v1882 = vpack.c.b16 %v1483, %v1476
    %v1883 = vpack.c.b16 %v1484, %v1477
    %v1884 = vpack.c.b16 %v1485, %v1478
    %v1885 = vpack.c.b16 %v1493, %v1486
    %v1886 = vpack.c.b16 %v1494, %v1487
    %v1887 = vpack.c.b16 %v1495, %v1488
    %v1888 = vpack.c.b16 %v1496, %v1489
    %v1889 = vpack.c.b16 %v1497, %v1490
    %v1890 = vpack.c.b16 %v1498, %v1491
    %v1891 = vpack.c.b16 %v1499, %v1492
    %v1892 = vpack.c.b16 %v1507, %v1500
    %v1893 = vpack.c.b16 %v1508, %v1501
    %v1894 = vpack.c.b16 %v1509, %v1502
    %v1895 = vpack.c.b16 %v1510, %v1503
    %v1896 = vpack.c.b16 %v1511, %v1504
    %v1897 = vpack.c.b16 %v1512, %v1505
    %v1898 = vpack.c.b16 %v1513, %v1506
    %v1899 = vpack.c.b16 %v1521, %v1514
    %v1900 = vpack.c.b16 %v1522, %v1515
    %v1901 = vpack.c.b16 %v1523, %v1516
    %v1902 = vpack.c.b16 %v1524, %v1517
    %v1903 = vpack.c.b16 %v1525, %v1518
    %v1904 = vpack.c.b16 %v1526, %v1519
    %v1905 = vpack.c.b16 %v1527, %v1520
    %v1906 = vpack.c.b16 %v1535, %v1528
    %v1907 = vpack.c.b16 %v1536, %v1529
    %v1908 = vpack.c.b16 %v1537, %v1530
    %v1909 = vpack.c.b16 %v1538, %v1531
    %v1910 = vpack.c.b16 %v1539, %v1532
    %v1911 = vpack.c.b16 %v1540, %v1533
    %v1912 = vpack.c.b16 %v1541, %v1534
    %v1913 = vpack.c.b16 %v1549, %v1542
    %v1914 = vpack.c.b16 %v1550, %v1543
    %v1915 = vpack.c.b16 %v1551, %v1544
    %v1916 = vpack.c.b16 %v1552, %v1545
    %v1917 = vpack.c.b16 %v1553, %v1546
    %v1918 = vpack.c.b16 %v1554, %v1547
    %v1919 = vpack.c.b16 %v1555, %v1548
    %v1920 = vpack.c.b16 %v1563, %v1556
    %v1921 = vpack.c.b16 %v1564, %v1557
    %v1922 = vpack.c.b16 %v1565, %v1558
    %v1923 = vpack.c.b16 %v1566, %v1559
    %v1924 = vpack.c.b16 %v1567, %v1560
    %v1925 = vpack.c.b16 %v1568, %v1561
    %v1926 = vpack.c.b16 %v1569, %v1562
    %v1927 = vpack.c.b16 %v1577, %v1570
    %v1928 = vpack.c.b16 %v1578, %v1571
    %v1929 = vpack.c.b16 %v1579, %v1572
    %v1930 = vpack.c.b16 %v1580, %v1573
    %v1931 = vpack.c.b16 %v1581, %v1574
    %v1932 = vpack.c.b16 %v1582, %v1575
    %v1933 = vpack.c.b16 %v1583, %v1576
    %v1934 = vpack.c.b16 %v1591, %v1584
    %v1935 = vpack.c.b16 %v1592, %v1585
    %v1936 = vpack.c.b16 %v1593, %v1586
    %v1937 = vpack.c.b16 %v1594, %v1587
    %v1938 = vpack.c.b16 %v1595, %v1588
    %v1939 = vpack.c.b16 %v1596, %v1589
    %v1940 = vpack.c.b16 %v1597, %v1590
    %v1941 = vpack.c.b16 %v1605, %v1598
    %v1942 = vpack.c.b16 %v1606, %v1599
    %v1943 = vpack.c.b16 %v1607, %v1600
    %v1944 = vpack.c.b16 %v1608, %v1601
    %v1945 = vpack.c.b16 %v1609, %v1602
    %v1946 = vpack.c.b16 %v1610, %v1603
    %v1947 = vpack.c.b16 %v1611, %v1604
    %v1948 = vpack.c.b16 %v1619, %v1612
    %v1949 = vpack.c.b16 %v1620, %v1613
    %v1950 = vpack.c.b16 %v1621, %v1614
    %v1951 = vpack.c.b16 %v1622, %v1615
    %v1952 = vpack.c.b16 %v1623, %v1616
    %v1953 = vpack.c.b16 %v1624, %v1617
    %v1954 = vpack.c.b16 %v1625, %v1618
    %v1955 = vpack.c.b16 %v1633, %v1626
    %v1956 = vpack.c.b16 %v1634, %v1627
    %v1957 = vpack.c.b16 %v1635, %v1628
    %v1958 = vpack.c.b16 %v1636, %v1629
    %v1959 = vpack.c.b16 %v1637, %v1630
    %v1960 = vpack.c.b16 %v1638, %v1631
    %v1961 = vpack.c.b16 %v1639, %v1632
    %v1962 = vpack.c.b16 %v1647, %v1640
    %v1963 = vpack.c.b16 %v1648, %v1641
    %v1964 = vpack.c.b16 %v1649, %v1642
    %v1965 = vpack.c.b16 %v1650, %v1643
    %v1966 = vpack.c.b16 %v1651, %v1644
    %v1967 = vpack.c.b16 %v1652, %v1645
    %v1968 = vpack.c.b16 %v1653, %v1646
    %v1969 = vpack.c.b16 %v1661, %v1654
    %v1970 = vpack.c.b16 %v1662, %v1655
    %v1971 = vpack.c.b16 %v1663, %v1656
    %v1972 = vpack.c.b16 %v1664, %v1657
    %v1973 = vpack.c.b16 %v1665, %v1658
    %v1974 = vpack.c.b16 %v1666, %v1659
    %v1975 = vpack.c.b16 %v1667, %v1660
    %v1976 = vpack.c.b16 %v1675, %v1668
    %v1977 = vpack.c.b16 %v1676, %v1669
    %v1978 = vpack.c.b16 %v1677, %v1670
    %v1979 = vpack.c.b16 %v1678, %v1671
    %v1980 = vpack.c.b16 %v1679, %v1672
    %v1981 = vpack.c.b16 %v1680, %v1673
    %v1982 = vpack.c.b16 %v1681, %v1674
    %v1983 = vpack.c.b16 %v1689, %v1682
    %v1984 = vpack.c.b16 %v1690, %v1683
    %v1985 = vpack.c.b16 %v1691, %v1684
    %v1986 = vpack.c.b16 %v1692, %v1685
    %v1987 = vpack.c.b16 %v1693, %v1686
    %v1988 = vpack.c.b16 %v1694, %v1687
    %v1989 = vpack.c.b16 %v1695, %v1688
    %v1990 = vpack.c.b16 %v1703, %v1696
    %v1991 = vpack.c.b16 %v1704, %v1697
    %v1992 = vpack.c.b16 %v1705, %v1698
    %v1993 = vpack.c.b16 %v1706, %v1699
    %v1994 = vpack.c.b16 %v1707, %v1700
    %v1995 = vpack.c.b16 %v1708, %v1701
    %v1996 = vpack.c.b16 %v1709, %v1702
    %v1997 = vpack.c.b16 %v1717, %v1710
    %v1998 = vpack.c.b16 %v1718, %v1711
    %v1999 = vpack.c.b16 %v1719, %v1712
    %v2000 = vpack.c.b16 %v1720, %v1713
    %v2001 = vpack.c.b16 %v1721, %v1714
    %v2002 = vpack.c.b16 %v1722, %v1715
    %v2003 = vpack.c.b16 %v1723, %v1716
    %v2004 = vpack.c.b16 %v1731, %v1724
    %v2005 = vpack.c.b16 %v1732, %v1725
    %v2006 = vpack.c.b16 %v1733, %v1726
    %v2007 = vpack.c.b16 %v1734, %v1727
    %v2008 = vpack.c.b16 %v1735, %v1728
    %v2009 = vpack.c.b16 %v1736, %v1729
    %v2010 = vpack.c.b16 %v1737, %v1730
    %v2011 = vpack.c.b16 %v1745, %v1738
    %v2012 = vpack.c.b16 %v1746, %v1739
    %v2013 = vpack.c.b16 %v1747, %v1740
    %v2014 = vpack.c.b16 %v1748, %v1741
    %v2015 = vpack.c.b16 %v1749, %v1742
    %v2016 = vpack.c.b16 %v1750, %v1743
    %v2017 = vpack.c.b16 %v1751, %v1744
    %v2018 = vpack.c.b16 %v1759, %v1752
    %v2019 = vpack.c.b16 %v1760, %v1753
    %v2020 = vpack.c.b16 %v1761, %v1754
    %v2021 = vpack.c.b16 %v1762, %v1755
    %v2022 = vpack.c.b16 %v1763, %v1756
    %v2023 = vpack.c.b16 %v1764, %v1757
    %v2024 = vpack.c.b16 %v1765, %v1758
    %v2025 = vpack.c.b16 %v1773, %v1766
    %v2026 = vpack.c.b16 %v1774, %v1767
    %v2027 = vpack.c.b16 %v1775, %v1768
    %v2028 = vpack.c.b16 %v1776, %v1769
    %v2029 = vpack.c.b16 %v1777, %v1770
    %v2030 = vpack.c.b16 %v1778, %v1771
    %v2031 = vpack.c.b16 %v1779, %v1772
    %v2032 = vpack.c.b16 %v1787, %v1780
    %v2033 = vpack.c.b16 %v1788, %v1781
    %v2034 = vpack.c.b16 %v1789, %v1782
    %v2035 = vpack.c.b16 %v1790, %v1783
    %v2036 = vpack.c.b16 %v1791, %v1784
    %v2037 = vpack.c.b16 %v1792, %v1785
    %v2038 = vpack.c.b16 %v1793, %v1786
    %v2039 = vpack.c.b16 %v1801, %v1794
    %v2040 = vpack.c.b16 %v1802, %v1795
    %v2041 = vpack.c.b16 %v1803, %v1796
    %v2042 = vpack.c.b16 %v1804, %v1797
    %v2043 = vpack.c.b16 %v1805, %v1798
    %v2044 = vpack.c.b16 %v1806, %v1799
    %v2045 = vpack.c.b16 %v1807, %v1800
    %v2046 = vpack.c.b16 %v1815, %v1808
    %v2047 = vpack.c.b16 %v1816, %v1809
    %v2048 = vpack.c.b16 %v1817, %v1810
    %v2049 = vpack.c.b16 %v1818, %v1811
    %v2050 = vpack.c.b16 %v1819, %v1812
    %v2051 = vpack.c.b16 %v1820, %v1813
    %v2052 = vpack.c.b16 %v1821, %v1814
    %v2053 = vpack.c.b16 %v1829, %v1822
    %v2054 = vpack.c.b16 %v1830, %v1823
    %v2055 = vpack.c.b16 %v1831, %v1824
    %v2056 = vpack.c.b16 %v1832, %v1825
    %v2057 = vpack.c.b16 %v1833, %v1826
    %v2058 = vpack.c.b16 %v1834, %v1827
    %v2059 = vpack.c.b16 %v1835, %v1828
    %2284 = vmatprep.subr.bf16.mxu0 %v1886
    %2285 = vmatpush1.bf16.msra.mxu0 %v1885
    %2286 = vmatprep.subr.bf16.mxu0 %v1879
    %2287 = vmatpush1.bf16.msra.mxu0 %v1878
    %2288 = vmatprep.subr.bf16.mxu0 %v1872
    %2289 = vmatpush1.bf16.msra.mxu0 %v1871
    %2290 = vmatprep.subr.bf16.mxu0 %v1865
    %2291 = vmatpush1.bf16.msra.mxu0 %v1864
    %2292 = vmatprep.subr.bf16.mxu0 %v1858
    %2293 = vmatpush1.bf16.msra.mxu0 %v1857
    %2294 = vmatprep.subr.bf16.mxu0 %v1851
    %2295 = vmatpush1.bf16.msra.mxu0 %v1850
    %2296 = vmatprep.subr.bf16.mxu0 %v1844
    %2297 = vmatpush1.bf16.msra.mxu0 %v1843
    %2298 = vmatprep.subr.bf16.mxu0 %v1837
    %2299 = vmatpush1.bf16.msra.mxu0 %v1836
    %2300 = vmatprep.subr.bf16.mxu0 %v1942
    %2301 = vmatpush2.bf16.msra.mxu0 %v1941
    %2302 = vmatprep.subr.bf16.mxu0 %v1935
    %2303 = vmatpush2.bf16.msra.mxu0 %v1934
    %2304 = vmatprep.subr.bf16.mxu0 %v1928
    %2305 = vmatpush2.bf16.msra.mxu0 %v1927
    %2306 = vmatprep.subr.bf16.mxu0 %v1921
    %2307 = vmatpush2.bf16.msra.mxu0 %v1920
    %2308 = vmatprep.subr.bf16.mxu0 %v1914
    %2309 = vmatpush2.bf16.msra.mxu0 %v1913
    %2310 = vmatprep.subr.bf16.mxu0 %v1907
    %2311 = vmatpush2.bf16.msra.mxu0 %v1906
    %2312 = vmatprep.subr.bf16.mxu0 %v1900
    %2313 = vmatpush2.bf16.msra.mxu0 %v1899
    %2314 = vmatprep.subr.bf16.mxu0 %v1893
    %2315 = vmatpush2.bf16.msra.mxu0 %v1892
    %2316 = vmatprep.mubr.bf16.mxu0 %v837
    %2317 = vmatmul.mubr.bf16.gmra.mxu0 %v836
    %v2318 = vpop.f32.mrf.mxu0
    %v2319 = vadd.f32 %v1100, %v2318
    %v2320 = vpop.f32.mrf.mxu0
    %v2321 = vadd.f32 %v1104, %v2320
    %v2322 = vpop.f32.mrf.mxu0
    %v2323 = vpop.f32.mrf.mxu0
    %2324 = vdwg.mxu0
    %2325 = vmatprep.subr.bf16.mxu0 %v1998
    %2326 = vmatpush1.bf16.msra.mxu0 %v1997
    %2327 = vmatprep.subr.bf16.mxu0 %v1991
    %2328 = vmatpush1.bf16.msra.mxu0 %v1990
    %2329 = vmatprep.subr.bf16.mxu0 %v1984
    %2330 = vmatpush1.bf16.msra.mxu0 %v1983
    %2331 = vmatprep.subr.bf16.mxu0 %v1977
    %2332 = vmatpush1.bf16.msra.mxu0 %v1976
    %2333 = vmatprep.subr.bf16.mxu0 %v1970
    %2334 = vmatpush1.bf16.msra.mxu0 %v1969
    %2335 = vmatprep.subr.bf16.mxu0 %v1963
    %2336 = vmatpush1.bf16.msra.mxu0 %v1962
    %2337 = vmatprep.subr.bf16.mxu0 %v1956
    %2338 = vmatpush1.bf16.msra.mxu0 %v1955
    %2339 = vmatprep.subr.bf16.mxu0 %v1949
    %2340 = vmatpush1.bf16.msra.mxu0 %v1948
    %2341 = vmatprep.subr.bf16.mxu0 %v2054
    %2342 = vmatpush2.bf16.msra.mxu0 %v2053
    %2343 = vmatprep.subr.bf16.mxu0 %v2047
    %2344 = vmatpush2.bf16.msra.mxu0 %v2046
    %2345 = vmatprep.subr.bf16.mxu0 %v2040
    %2346 = vmatpush2.bf16.msra.mxu0 %v2039
    %2347 = vmatprep.subr.bf16.mxu0 %v2033
    %2348 = vmatpush2.bf16.msra.mxu0 %v2032
    %2349 = vmatprep.subr.bf16.mxu0 %v2026
    %2350 = vmatpush2.bf16.msra.mxu0 %v2025
    %2351 = vmatprep.subr.bf16.mxu0 %v2019
    %2352 = vmatpush2.bf16.msra.mxu0 %v2018
    %2353 = vmatprep.subr.bf16.mxu0 %v2012
    %2354 = vmatpush2.bf16.msra.mxu0 %v2011
    %2355 = vmatprep.subr.bf16.mxu0 %v2005
    %2356 = vmatpush2.bf16.msra.mxu0 %v2004
    %2357 = vmatprep.mubr.bf16.mxu0 %v839
    %2358 = vmatmul.mubr.bf16.gmra.mxu0 %v838
    %v2359 = vpop.f32.mrf.mxu0
    %v2360 = vadd.f32 %v2319, %v2359
    %v2361 = vpop.f32.mrf.mxu0
    %v2362 = vadd.f32 %v2321, %v2361
    %v2363 = vpop.f32.mrf.mxu0
    %v2364 = vpop.f32.mrf.mxu0
    %2365 = vdwg.mxu0
    %2366 = vmatprep.subr.bf16.mxu0 %v1888
    %2367 = vmatpush1.bf16.msra.mxu0 %v1887
    %2368 = vmatprep.subr.bf16.mxu0 %v1881
    %2369 = vmatpush1.bf16.msra.mxu0 %v1880
    %2370 = vmatprep.subr.bf16.mxu0 %v1874
    %2371 = vmatpush1.bf16.msra.mxu0 %v1873
    %2372 = vmatprep.subr.bf16.mxu0 %v1867
    %2373 = vmatpush1.bf16.msra.mxu0 %v1866
    %2374 = vmatprep.subr.bf16.mxu0 %v1860
    %2375 = vmatpush1.bf16.msra.mxu0 %v1859
    %2376 = vmatprep.subr.bf16.mxu0 %v1853
    %2377 = vmatpush1.bf16.msra.mxu0 %v1852
    %2378 = vmatprep.subr.bf16.mxu0 %v1846
    %2379 = vmatpush1.bf16.msra.mxu0 %v1845
    %2380 = vmatprep.subr.bf16.mxu0 %v1839
    %2381 = vmatpush1.bf16.msra.mxu0 %v1838
    %2382 = vmatprep.subr.bf16.mxu0 %v1944
    %2383 = vmatpush2.bf16.msra.mxu0 %v1943
    %2384 = vmatprep.subr.bf16.mxu0 %v1937
    %2385 = vmatpush2.bf16.msra.mxu0 %v1936
    %2386 = vmatprep.subr.bf16.mxu0 %v1930
    %2387 = vmatpush2.bf16.msra.mxu0 %v1929
    %2388 = vmatprep.subr.bf16.mxu0 %v1923
    %2389 = vmatpush2.bf16.msra.mxu0 %v1922
    %2390 = vmatprep.subr.bf16.mxu0 %v1916
    %2391 = vmatpush2.bf16.msra.mxu0 %v1915
    %2392 = vmatprep.subr.bf16.mxu0 %v1909
    %2393 = vmatpush2.bf16.msra.mxu0 %v1908
    %2394 = vmatprep.subr.bf16.mxu0 %v1902
    %2395 = vmatpush2.bf16.msra.mxu0 %v1901
    %2396 = vmatprep.subr.bf16.mxu0 %v1895
    %2397 = vmatpush2.bf16.msra.mxu0 %v1894
    %2398 = vmatprep.mubr.bf16.mxu0 %v837
    %2399 = vmatmul.mubr.bf16.gmra.mxu0 %v836
    %v2400 = vpop.f32.mrf.mxu0
    %v2401 = vadd.f32 %v1108, %v2400
    %v2402 = vpop.f32.mrf.mxu0
    %v2403 = vadd.f32 %v1112, %v2402
    %v2404 = vpop.f32.mrf.mxu0
    %v2405 = vpop.f32.mrf.mxu0
    %2406 = vdwg.mxu0
    %2407 = vmatprep.subr.bf16.mxu0 %v2000
    %2408 = vmatpush1.bf16.msra.mxu0 %v1999
    %2409 = vmatprep.subr.bf16.mxu0 %v1993
    %2410 = vmatpush1.bf16.msra.mxu0 %v1992
    %2411 = vmatprep.subr.bf16.mxu0 %v1986
    %2412 = vmatpush1.bf16.msra.mxu0 %v1985
    %2413 = vmatprep.subr.bf16.mxu0 %v1979
    %2414 = vmatpush1.bf16.msra.mxu0 %v1978
    %2415 = vmatprep.subr.bf16.mxu0 %v1972
    %2416 = vmatpush1.bf16.msra.mxu0 %v1971
    %2417 = vmatprep.subr.bf16.mxu0 %v1965
    %2418 = vmatpush1.bf16.msra.mxu0 %v1964
    %2419 = vmatprep.subr.bf16.mxu0 %v1958
    %2420 = vmatpush1.bf16.msra.mxu0 %v1957
    %2421 = vmatprep.subr.bf16.mxu0 %v1951
    %2422 = vmatpush1.bf16.msra.mxu0 %v1950
    %2423 = vmatprep.subr.bf16.mxu0 %v2056
    %2424 = vmatpush2.bf16.msra.mxu0 %v2055
    %2425 = vmatprep.subr.bf16.mxu0 %v2049
    %2426 = vmatpush2.bf16.msra.mxu0 %v2048
    %2427 = vmatprep.subr.bf16.mxu0 %v2042
    %2428 = vmatpush2.bf16.msra.mxu0 %v2041
    %2429 = vmatprep.subr.bf16.mxu0 %v2035
    %2430 = vmatpush2.bf16.msra.mxu0 %v2034
    %2431 = vmatprep.subr.bf16.mxu0 %v2028
    %2432 = vmatpush2.bf16.msra.mxu0 %v2027
    %2433 = vmatprep.subr.bf16.mxu0 %v2021
    %2434 = vmatpush2.bf16.msra.mxu0 %v2020
    %2435 = vmatprep.subr.bf16.mxu0 %v2014
    %2436 = vmatpush2.bf16.msra.mxu0 %v2013
    %2437 = vmatprep.subr.bf16.mxu0 %v2007
    %2438 = vmatpush2.bf16.msra.mxu0 %v2006
    %2439 = vmatprep.mubr.bf16.mxu0 %v839
    %2440 = vmatmul.mubr.bf16.gmra.mxu0 %v838
    %v2441 = vpop.f32.mrf.mxu0
    %v2442 = vadd.f32 %v2401, %v2441
    %v2443 = vpop.f32.mrf.mxu0
    %v2444 = vadd.f32 %v2403, %v2443
    %v2445 = vpop.f32.mrf.mxu0
    %v2446 = vpop.f32.mrf.mxu0
    %2447 = vdwg.mxu0
    %2448 = vmatprep.subr.bf16.mxu0 %v1890
    %2449 = vmatpush1.bf16.msra.mxu0 %v1889
    %2450 = vmatprep.subr.bf16.mxu0 %v1883
    %2451 = vmatpush1.bf16.msra.mxu0 %v1882
    %2452 = vmatprep.subr.bf16.mxu0 %v1876
    %2453 = vmatpush1.bf16.msra.mxu0 %v1875
    %2454 = vmatprep.subr.bf16.mxu0 %v1869
    %2455 = vmatpush1.bf16.msra.mxu0 %v1868
    %2456 = vmatprep.subr.bf16.mxu0 %v1862
    %2457 = vmatpush1.bf16.msra.mxu0 %v1861
    %2458 = vmatprep.subr.bf16.mxu0 %v1855
    %2459 = vmatpush1.bf16.msra.mxu0 %v1854
    %2460 = vmatprep.subr.bf16.mxu0 %v1848
    %2461 = vmatpush1.bf16.msra.mxu0 %v1847
    %2462 = vmatprep.subr.bf16.mxu0 %v1841
    %2463 = vmatpush1.bf16.msra.mxu0 %v1840
    %2464 = vmatprep.subr.bf16.mxu0 %v1946
    %2465 = vmatpush2.bf16.msra.mxu0 %v1945
    %2466 = vmatprep.subr.bf16.mxu0 %v1939
    %2467 = vmatpush2.bf16.msra.mxu0 %v1938
    %2468 = vmatprep.subr.bf16.mxu0 %v1932
    %2469 = vmatpush2.bf16.msra.mxu0 %v1931
    %2470 = vmatprep.subr.bf16.mxu0 %v1925
    %2471 = vmatpush2.bf16.msra.mxu0 %v1924
    %2472 = vmatprep.subr.bf16.mxu0 %v1918
    %2473 = vmatpush2.bf16.msra.mxu0 %v1917
    %2474 = vmatprep.subr.bf16.mxu0 %v1911
    %2475 = vmatpush2.bf16.msra.mxu0 %v1910
    %2476 = vmatprep.subr.bf16.mxu0 %v1904
    %2477 = vmatpush2.bf16.msra.mxu0 %v1903
    %2478 = vmatprep.subr.bf16.mxu0 %v1897
    %2479 = vmatpush2.bf16.msra.mxu0 %v1896
    %2480 = vmatprep.mubr.bf16.mxu0 %v837
    %2481 = vmatmul.mubr.bf16.gmra.mxu0 %v836
    %v2482 = vpop.f32.mrf.mxu0
    %v2483 = vadd.f32 %v1116, %v2482
    %v2484 = vpop.f32.mrf.mxu0
    %v2485 = vadd.f32 %v1120, %v2484
    %v2486 = vpop.f32.mrf.mxu0
    %v2487 = vpop.f32.mrf.mxu0
    %2488 = vdwg.mxu0
    %2489 = vmatprep.subr.bf16.mxu0 %v2002
    %2490 = vmatpush1.bf16.msra.mxu0 %v2001
    %2491 = vmatprep.subr.bf16.mxu0 %v1995
    %2492 = vmatpush1.bf16.msra.mxu0 %v1994
    %2493 = vmatprep.subr.bf16.mxu0 %v1988
    %2494 = vmatpush1.bf16.msra.mxu0 %v1987
    %2495 = vmatprep.subr.bf16.mxu0 %v1981
    %2496 = vmatpush1.bf16.msra.mxu0 %v1980
    %2497 = vmatprep.subr.bf16.mxu0 %v1974
    %2498 = vmatpush1.bf16.msra.mxu0 %v1973
    %2499 = vmatprep.subr.bf16.mxu0 %v1967
    %2500 = vmatpush1.bf16.msra.mxu0 %v1966
    %2501 = vmatprep.subr.bf16.mxu0 %v1960
    %2502 = vmatpush1.bf16.msra.mxu0 %v1959
    %2503 = vmatprep.subr.bf16.mxu0 %v1953
    %2504 = vmatpush1.bf16.msra.mxu0 %v1952
    %2505 = vmatprep.subr.bf16.mxu0 %v2058
    %2506 = vmatpush2.bf16.msra.mxu0 %v2057
    %2507 = vmatprep.subr.bf16.mxu0 %v2051
    %2508 = vmatpush2.bf16.msra.mxu0 %v2050
    %2509 = vmatprep.subr.bf16.mxu0 %v2044
    %2510 = vmatpush2.bf16.msra.mxu0 %v2043
    %2511 = vmatprep.subr.bf16.mxu0 %v2037
    %2512 = vmatpush2.bf16.msra.mxu0 %v2036
    %2513 = vmatprep.subr.bf16.mxu0 %v2030
    %2514 = vmatpush2.bf16.msra.mxu0 %v2029
    %2515 = vmatprep.subr.bf16.mxu0 %v2023
    %2516 = vmatpush2.bf16.msra.mxu0 %v2022
    %2517 = vmatprep.subr.bf16.mxu0 %v2016
    %2518 = vmatpush2.bf16.msra.mxu0 %v2015
    %2519 = vmatprep.subr.bf16.mxu0 %v2009
    %2520 = vmatpush2.bf16.msra.mxu0 %v2008
    %2521 = vmatprep.mubr.bf16.mxu0 %v839
    %2522 = vmatmul.mubr.bf16.gmra.mxu0 %v838
    %v2523 = vpop.f32.mrf.mxu0
    %v2524 = vadd.f32 %v2483, %v2523
    %v2525 = vpop.f32.mrf.mxu0
    %v2526 = vadd.f32 %v2485, %v2525
    %v2527 = vpop.f32.mrf.mxu0
    %v2528 = vpop.f32.mrf.mxu0
    %2529 = vdwg.mxu0
    %2530 = vmatprep.subr.bf16.mxu0 0
    %2531 = vmatpush1.bf16.msra.mxu0 %v1891
    %2532 = vmatprep.subr.bf16.mxu0 0
    %2533 = vmatpush1.bf16.msra.mxu0 %v1884
    %2534 = vmatprep.subr.bf16.mxu0 0
    %2535 = vmatpush1.bf16.msra.mxu0 %v1877
    %2536 = vmatprep.subr.bf16.mxu0 0
    %2537 = vmatpush1.bf16.msra.mxu0 %v1870
    %2538 = vmatprep.subr.bf16.mxu0 0
    %2539 = vmatpush1.bf16.msra.mxu0 %v1863
    %2540 = vmatprep.subr.bf16.mxu0 0
    %2541 = vmatpush1.bf16.msra.mxu0 %v1856
    %2542 = vmatprep.subr.bf16.mxu0 0
    %2543 = vmatpush1.bf16.msra.mxu0 %v1849
    %2544 = vmatprep.subr.bf16.mxu0 0
    %2545 = vmatpush1.bf16.msra.mxu0 %v1842
    %2546 = vmatprep.subr.bf16.mxu0 0
    %2547 = vmatpush2.bf16.msra.mxu0 %v1947
    %2548 = vmatprep.subr.bf16.mxu0 0
    %2549 = vmatpush2.bf16.msra.mxu0 %v1940
    %2550 = vmatprep.subr.bf16.mxu0 0
    %2551 = vmatpush2.bf16.msra.mxu0 %v1933
    %2552 = vmatprep.subr.bf16.mxu0 0
    %2553 = vmatpush2.bf16.msra.mxu0 %v1926
    %2554 = vmatprep.subr.bf16.mxu0 0
    %2555 = vmatpush2.bf16.msra.mxu0 %v1919
    %2556 = vmatprep.subr.bf16.mxu0 0
    %2557 = vmatpush2.bf16.msra.mxu0 %v1912
    %2558 = vmatprep.subr.bf16.mxu0 0
    %2559 = vmatpush2.bf16.msra.mxu0 %v1905
    %2560 = vmatprep.subr.bf16.mxu0 0
    %2561 = vmatpush2.bf16.msra.mxu0 %v1898
    %2562 = vmatprep.mubr.bf16.mxu0 %v837
    %2563 = vmatmul.mubr.bf16.gmra.mxu0 %v836
    %v2564 = vpop.f32.mrf.mxu0
    %v2565 = vadd.f32 %v1124, %v2564
    %v2566 = vpop.f32.mrf.mxu0
    %v2567 = vpop.f32.mrf.mxu0
    %v2568 = vpop.f32.mrf.mxu0
    %2569 = vdwg.mxu0
    %2570 = vmatprep.subr.bf16.mxu0 0
    %2571 = vmatpush1.bf16.msra.mxu0 %v2003
    %2572 = vmatprep.subr.bf16.mxu0 0
    %2573 = vmatpush1.bf16.msra.mxu0 %v1996
    %2574 = vmatprep.subr.bf16.mxu0 0
    %2575 = vmatpush1.bf16.msra.mxu0 %v1989
    %2576 = vmatprep.subr.bf16.mxu0 0
    %2577 = vmatpush1.bf16.msra.mxu0 %v1982
    %2578 = vmatprep.subr.bf16.mxu0 0
    %2579 = vmatpush1.bf16.msra.mxu0 %v1975
    %2580 = vmatprep.subr.bf16.mxu0 0
    %2581 = vmatpush1.bf16.msra.mxu0 %v1968
    %2582 = vmatprep.subr.bf16.mxu0 0
    %2583 = vmatpush1.bf16.msra.mxu0 %v1961
    %2584 = vmatprep.subr.bf16.mxu0 0
    %2585 = vmatpush1.bf16.msra.mxu0 %v1954
    %2586 = vmatprep.subr.bf16.mxu0 0
    %2587 = vmatpush2.bf16.msra.mxu0 %v2059
    %2588 = vmatprep.subr.bf16.mxu0 0
    %2589 = vmatpush2.bf16.msra.mxu0 %v2052
    %2590 = vmatprep.subr.bf16.mxu0 0
    %2591 = vmatpush2.bf16.msra.mxu0 %v2045
    %2592 = vmatprep.subr.bf16.mxu0 0
    %2593 = vmatpush2.bf16.msra.mxu0 %v2038
    %2594 = vmatprep.subr.bf16.mxu0 0
    %2595 = vmatpush2.bf16.msra.mxu0 %v2031
    %2596 = vmatprep.subr.bf16.mxu0 0
    %2597 = vmatpush2.bf16.msra.mxu0 %v2024
    %2598 = vmatprep.subr.bf16.mxu0 0
    %2599 = vmatpush2.bf16.msra.mxu0 %v2017
    %2600 = vmatprep.subr.bf16.mxu0 0
    %2601 = vmatpush2.bf16.msra.mxu0 %v2010
    %2602 = vmatprep.mubr.bf16.mxu0 %v839
    %2603 = vmatmul.mubr.bf16.gmra.mxu0 %v838
    %v2604 = vpop.f32.mrf.mxu0
    %v2605 = vadd.f32 %v2565, %v2604
    %v2606 = vpop.f32.mrf.mxu0
    %v2607 = vpop.f32.mrf.mxu0
    %v2608 = vpop.f32.mrf.mxu0
    %2609 = vdwg.mxu0
    %v2610 = vxor.u32 %v2360, 2147483648
    %v2611 = vxor.u32 %v2362, 2147483648
    %v2612 = vxor.u32 %v2442, 2147483648
    %v2613 = vxor.u32 %v2444, 2147483648
    %v2614 = vxor.u32 %v2524, 2147483648
    %v2615 = vxor.u32 %v2526, 2147483648
    %v2616 = vxor.u32 %v2605, 2147483648
    %v2617 = vmul.f32 %v2610, 1.442695
    %v2618 = vpow.pop %v2617
    %v2619 = vmul.f32 %v2611, 1.442695
    %v2620 = vpow.pop %v2619
    %v2621 = vmul.f32 %v2612, 1.442695
    %v2622 = vpow.pop %v2621
    %v2623 = vmul.f32 %v2613, 1.442695
    %v2624 = vpow.pop %v2623
    %v2625 = vmul.f32 %v2614, 1.442695
    %v2626 = vpow.pop %v2625
    %v2627 = vmul.f32 %v2615, 1.442695
    %v2628 = vpow.pop %v2627
    %v2629 = vmul.f32 %v2616, 1.442695
    %v2630 = vpow.pop %v2629
    %v2631 = vadd.f32 %v2618, 1.0
    %v2632 = vadd.f32 %v2620, 1.0
    %v2633 = vadd.f32 %v2622, 1.0
    %v2634 = vadd.f32 %v2624, 1.0
    %v2635 = vadd.f32 %v2626, 1.0
    %v2636 = vadd.f32 %v2628, 1.0
    %v2637 = vadd.f32 %v2630, 1.0
    %v2638 = vrcp.pop %v2631
    %v2639 = vmul.f32 1.0, %v2638
    %v2640 = vrcp.pop %v2632
    %v2641 = vmul.f32 1.0, %v2640
    %v2642 = vrcp.pop %v2633
    %v2643 = vmul.f32 1.0, %v2642
    %v2644 = vrcp.pop %v2634
    %v2645 = vmul.f32 1.0, %v2644
    %v2646 = vrcp.pop %v2635
    %v2647 = vmul.f32 1.0, %v2646
    %v2648 = vrcp.pop %v2636
    %v2649 = vmul.f32 1.0, %v2648
    %v2650 = vrcp.pop %v2637
    %v2651 = vmul.f32 1.0, %v2650
    %2652 = vst [vmem:[#allocation13] sm:$0xff] %v2639
    %2653 = vst [vmem:[#allocation13 + $0x8] sm:$0xff] %v2641
    %2654 = vst [vmem:[#allocation13 + $0x10] sm:$0xff] %v2643
    %2655 = vst [vmem:[#allocation13 + $0x18] sm:$0xff] %v2645
    %2656 = vst [vmem:[#allocation13 + $0x20] sm:$0xff] %v2647
    %2657 = vst [vmem:[#allocation13 + $0x28] sm:$0xff] %v2649
    %2658 = vst [vmem:[#allocation13 + $0x30] sm:$0xff] %v2651
    // Predicated region
    $region50: #{tpu_custom_call.1} parent=1 // pred_check
      _
    $region51: #{tpu_custom_call.1} parent=1 // pred_check_branch
      %2660 = sbr.rel (0) target = $region53
    $region52: #{tpu_custom_call.1} parent=1 // pred_region
      %s2662 = ssub.s32 896, 896
      %2663 = vsyncadd [#allocation4], %s2662
      %s2665 = sshll.u32 [#allocation13], 4
      %s2666 = int_to_ptr.vmem [resolvable:$true] %s2665
      %2668 = dma.vmem_to_hbm [thread:$0]  %s2666, 896, %s6, [#allocation4]
    $region53: #{tpu_custom_call.1} parent=1 // pred_fallthru
      _
    // Predicated region
    $region54: #{tpu_custom_call.1} parent=1 // pred_check
      _
    $region55: #{tpu_custom_call.1} parent=1 // pred_check_branch
      %2670 = sbr.rel (0) target = $region57
    $region56: #{tpu_custom_call.1} parent=1 // pred_region
      %2671 = dma.done [#allocation4], 896
    $region57: #{tpu_custom_call.1} parent=1 // pred_fallthru
      _
    %2672 = vsyncpa [#allocation3], 1
    %2673 = vsyncpa [#allocation6], 1
    %2674 = vsyncpa [#allocation9], 1
    %2675 = vsyncpa [#allocation12], 1
    %2676 = vsyncpa [#allocation4], 1

</llo_original>
